<compile_context>
chip_gen: v5e
topology: v5e:2x2
jax: 0.10.0
libtpu: 0.0.40
codegen_flags: <defaults>
</compile_context>

<pallas_src>
import functools

import jax
import jax.numpy as jnp
from jax.experimental import pallas as pl
from jax.experimental.pallas import tpu as pltpu


def _parallel_block_kernel(
    x_ref,            # (1, N, C)   f32
    a_ln_g_ref,       # (P, C)      f32   attn-branch LayerNorm gamma
    a_ln_b_ref,       # (P, C)      f32   attn-branch LayerNorm beta
    w_q_ref,          # (P, C, C)   bf16  (scale folded in)
    w_k_ref,          # (P, C, C)   bf16
    w_v_ref,          # (P, C, C)   bf16
    w_proj_ref,       # (P, H, dh, C) bf16 (proj rows split per head)
    b_proj_ref,       # (P, C)      f32
    f_ln_g_ref,       # (P, C)      f32   ffn-branch LayerNorm gamma
    f_ln_b_ref,       # (P, C)      f32   ffn-branch LayerNorm beta
    w_fc1_ref,        # (P, C, Hd)  bf16
    b_fc1_ref,        # (P, Hd)     f32
    w_fc2_ref,        # (P, Hd, C)  bf16
    b_fc2_ref,        # (P, C)      f32
    o_ref,            # (1, N, C)
    *,
    num_parallel,
    num_heads,
):
    x = x_ref[0].astype(jnp.float32)          # (N, C)
    N, C = x.shape
    dh = C // num_heads
    eps = 1e-5

    def layernorm(z, g, b):
        mu = jnp.mean(z, axis=-1, keepdims=True)
        var = jnp.mean((z - mu) ** 2, axis=-1, keepdims=True)
        return (z - mu) * jax.lax.rsqrt(var + eps) * g + b

    def gelu_exact(z):
        # nn.GELU default (erf-based), evaluated in f32 on the VALU.
        return 0.5 * z * (1.0 + jax.lax.erf(z * (2.0 ** -0.5)))

    # ---------------- parallel attention branches ----------------
    attn_sum = jnp.zeros((N, C), jnp.float32)
    for p in range(num_parallel):
        xn = layernorm(x, a_ln_g_ref[p:p + 1, :], a_ln_b_ref[p:p + 1, :])
        xb = xn.astype(jnp.bfloat16)
        # Full-width projections against contiguous bf16 weight slabs.
        q = jnp.dot(xb, w_q_ref[p], preferred_element_type=jnp.float32)   # scaled q
        k = jnp.dot(xb, w_k_ref[p], preferred_element_type=jnp.float32)
        v = jnp.dot(xb, w_v_ref[p], preferred_element_type=jnp.float32)

        for h in range(num_heads):
            lo = h * dh
            hi = lo + dh
            q_h = q[:, lo:hi].astype(jnp.bfloat16)   # (N, dh)
            k_h = k[:, lo:hi].astype(jnp.bfloat16)
            v_h = v[:, lo:hi].astype(jnp.bfloat16)

            # scores = q_h @ k_h.T  (scale already folded into w_q)
            s = jax.lax.dot_general(
                q_h, k_h, (((1,), (1,)), ((), ())),
                preferred_element_type=jnp.float32)                       # (N, N)
            s = s - jnp.max(s, axis=-1, keepdims=True)
            e = jnp.exp(s)
            a = e * pl.reciprocal(jnp.sum(e, axis=-1, keepdims=True), approx=True)

            ctx = jnp.dot(a.astype(jnp.bfloat16), v_h,
                          preferred_element_type=jnp.float32)             # (N, dh)
            # Fold this head's context directly into the output projection.
            attn_sum = attn_sum + jnp.dot(
                ctx.astype(jnp.bfloat16), w_proj_ref[p, h],
                preferred_element_type=jnp.float32)                       # (N, C)
        attn_sum = attn_sum + b_proj_ref[p:p + 1, :]
    x1 = x + attn_sum

    # ---------------- parallel MLP branches ----------------
    # TODO(synk): for large N, tile the token dimension and keep these sums in a
    # VMEM scratch accumulator / stream w_fc1 & w_fc2 over a K grid axis.
    ffn_sum = jnp.zeros((N, C), jnp.float32)
    for p in range(num_parallel):
        xn = layernorm(x1, f_ln_g_ref[p:p + 1, :], f_ln_b_ref[p:p + 1, :])
        h1 = jnp.dot(xn.astype(jnp.bfloat16), w_fc1_ref[p],
                     preferred_element_type=jnp.float32)
        h1 = gelu_exact(h1 + b_fc1_ref[p:p + 1, :])
        h2 = jnp.dot(h1.astype(jnp.bfloat16), w_fc2_ref[p],
                     preferred_element_type=jnp.float32)
        ffn_sum = ffn_sum + h2 + b_fc2_ref[p:p + 1, :]

    o_ref[0] = (x1 + ffn_sum).astype(o_ref.dtype)


def parallel_block(x, params, *, num_heads):
    """x: (B, N, C) float32; params: dict of stacked per-branch f32 weights."""
    B, N, C = x.shape
    P = params["a_ln_g"].shape[0]
    assert C % num_heads == 0, "dim must be divisible by num_heads"
    dh = C // num_heads
    scale = dh ** (-0.5)

    f32 = jnp.float32
    bf16 = jnp.bfloat16

    # Host-side weight prep (cheap XLA ops): split qkv into contiguous slabs,
    # fold the attention scale into w_q, split w_proj rows per head, cast to bf16.
    w_qkv = params["w_qkv"]                                   # (P, C, 3C)
    w_q = (w_qkv[:, :, 0 * C:1 * C] * scale).astype(bf16)     # (P, C, C)
    w_k = w_qkv[:, :, 1 * C:2 * C].astype(bf16)
    w_v = w_qkv[:, :, 2 * C:3 * C].astype(bf16)
    w_proj = params["w_proj"].reshape(P, num_heads, dh, C).astype(bf16)
    w_fc1 = params["w_fc1"].astype(bf16)                      # (P, C, Hd)
    w_fc2 = params["w_fc2"].astype(bf16)                      # (P, Hd, C)

    weights = [
        params["a_ln_g"].astype(f32), params["a_ln_b"].astype(f32),
        w_q, w_k, w_v, w_proj, params["b_proj"].astype(f32),
        params["f_ln_g"].astype(f32), params["f_ln_b"].astype(f32),
        w_fc1, params["b_fc1"].astype(f32),
        w_fc2, params["b_fc2"].astype(f32),
    ]

    def full_spec(shape):
        nd = len(shape)
        return pl.BlockSpec(shape, lambda *_args, _nd=nd: (0,) * _nd)

    kernel = functools.partial(
        _parallel_block_kernel, num_parallel=P, num_heads=num_heads
    )

    # Explicit scoped-VMEM budget: ~100 MiB on 128-MiB parts (v5e/v6e),
    # capacity - headroom on v7x (64 MiB physical). Fallback is v7x-safe.
    try:
        vmem_cap = pltpu.get_tpu_info().vmem_capacity_bytes
        vmem_limit = int(min(100 * 1024 * 1024, vmem_cap - 8 * 1024 * 1024))
    except Exception:
        vmem_limit = 56 * 1024 * 1024

    return pl.pallas_call(
        kernel,
        out_shape=jax.ShapeDtypeStruct((B, N, C), x.dtype),
        grid_spec=pltpu.PrefetchScalarGridSpec(
            num_scalar_prefetch=0,
            grid=(B,),
            in_specs=[pl.BlockSpec((1, N, C), lambda b: (b, 0, 0))]
            + [full_spec(tuple(w.shape)) for w in weights],
            out_specs=pl.BlockSpec((1, N, C), lambda b: (b, 0, 0)),
        ),
        compiler_params=pltpu.CompilerParams(
            dimension_semantics=("parallel",),
            vmem_limit_bytes=vmem_limit,
        ),
    )(x, *weights)


# ---------------- pure-JAX f32 reference (for correctness check) ----------------
def parallel_block_ref(x, params, *, num_heads):
    B, N, C = x.shape
    P = params["a_ln_g"].shape[0]
    dh = C // num_heads
    scale = dh ** (-0.5)
    eps = 1e-5

    def ln(z, g, b):
        mu = jnp.mean(z, axis=-1, keepdims=True)
        var = jnp.mean((z - mu) ** 2, axis=-1, keepdims=True)
        return (z - mu) / jnp.sqrt(var + eps) * g + b

    attn_sum = jnp.zeros_like(x)
    for p in range(P):
        xn = ln(x, params["a_ln_g"][p], params["a_ln_b"][p])
        qkv = xn @ params["w_qkv"][p]                                   # (B, N, 3C)
        qkv = qkv.reshape(B, N, 3, num_heads, dh).transpose(2, 0, 3, 1, 4)
        q, k, v = qkv[0], qkv[1], qkv[2]                                # (B, H, N, dh)
        a = jax.nn.softmax(jnp.einsum("bhnd,bhmd->bhnm", q, k) * scale, axis=-1)
        o = jnp.einsum("bhnm,bhmd->bhnd", a, v).transpose(0, 2, 1, 3).reshape(B, N, C)
        attn_sum = attn_sum + o @ params["w_proj"][p] + params["b_proj"][p]
    x1 = x + attn_sum

    ffn_sum = jnp.zeros_like(x1)
    for p in range(P):
        xn = ln(x1, params["f_ln_g"][p], params["f_ln_b"][p])
        h1 = jax.nn.gelu(xn @ params["w_fc1"][p] + params["b_fc1"][p], approximate=False)
        ffn_sum = ffn_sum + h1 @ params["w_fc2"][p] + params["b_fc2"][p]
    return x1 + ffn_sum


if __name__ == "__main__":
    # Small shapes consistent with the module.
    B, N, C = 2, 8, 32
    num_heads = 4
    num_parallel = 2
    mlp_ratio = 4.0
    H = int(C * mlp_ratio)

    key = jax.random.PRNGKey(0)
    ks = jax.random.split(key, 12)

    params = {
        # attention branches (qkv_bias=False -> no qkv bias)
        "a_ln_g": 1.0 + 0.02 * jax.random.normal(ks[0], (num_parallel, C), jnp.float32),
        "a_ln_b": 0.02 * jax.random.normal(ks[1], (num_parallel, C), jnp.float32),
        "w_qkv":  0.05 * jax.random.normal(ks[2], (num_parallel, C, 3 * C), jnp.float32),
        "w_proj": 0.05 * jax.random.normal(ks[3], (num_parallel, C, C), jnp.float32),
        "b_proj": 0.02 * jax.random.normal(ks[4], (num_parallel, C), jnp.float32),
        # mlp branches
        "f_ln_g": 1.0 + 0.02 * jax.random.normal(ks[5], (num_parallel, C), jnp.float32),
        "f_ln_b": 0.02 * jax.random.normal(ks[6], (num_parallel, C), jnp.float32),
        "w_fc1":  0.05 * jax.random.normal(ks[7], (num_parallel, C, H), jnp.float32),
        "b_fc1":  0.02 * jax.random.normal(ks[8], (num_parallel, H), jnp.float32),
        "w_fc2":  0.05 * jax.random.normal(ks[9], (num_parallel, H, C), jnp.float32),
        "b_fc2":  0.02 * jax.random.normal(ks[10], (num_parallel, C), jnp.float32),
    }

    x = jax.random.normal(ks[11], (B, N, C), jnp.float32)

    out = parallel_block(x, params, num_heads=num_heads)
    out = jax.block_until_ready(out)

    ref = parallel_block_ref(x, params, num_heads=num_heads)
    assert out.shape == (B, N, C)
    max_err = float(jnp.max(jnp.abs(out - ref)))
    # bf16 MXU operands (weights + activations) vs. the f32 reference.
    assert jnp.allclose(out, ref, atol=3e-2, rtol=3e-2), f"max abs err {max_err}"

    print("KERNEL_OK")
</pallas_src>

<mosaic_0001>
module attributes {stable_mosaic.version = 11 : i64} {
  func.func @_parallel_block_kernel(%arg0: i32, %arg1: memref<1x8x32xf32, #tpu.memory_space<vmem>>, %arg2: memref<2x32xf32, #tpu.memory_space<vmem>>, %arg3: memref<2x32xf32, #tpu.memory_space<vmem>>, %arg4: memref<2x32x32xbf16, #tpu.memory_space<vmem>>, %arg5: memref<2x32x32xbf16, #tpu.memory_space<vmem>>, %arg6: memref<2x32x32xbf16, #tpu.memory_space<vmem>>, %arg7: memref<2x4x8x32xbf16, #tpu.memory_space<vmem>>, %arg8: memref<2x32xf32, #tpu.memory_space<vmem>>, %arg9: memref<2x32xf32, #tpu.memory_space<vmem>>, %arg10: memref<2x32xf32, #tpu.memory_space<vmem>>, %arg11: memref<2x32x128xbf16, #tpu.memory_space<vmem>>, %arg12: memref<2x128xf32, #tpu.memory_space<vmem>>, %arg13: memref<2x128x32xbf16, #tpu.memory_space<vmem>>, %arg14: memref<2x32xf32, #tpu.memory_space<vmem>>, %arg15: memref<1x8x32xf32, #tpu.memory_space<vmem>>) attributes {dimension_semantics = [#tpu.dimension_semantics<parallel>], iteration_bounds = array<i64: 2>, scalar_prefetch = 0 : i64, scratch_operands = 0 : i64, tpu.core_type = #tpu.core_type<tc>, window_params = [{transform_indices = @transform_0, window_bounds = array<i64: 1, 8, 32>}, {pipeline_mode = #tpu.pipeline_mode<synchronous>, transform_indices = @transform_1, window_bounds = array<i64: 2, 32>}, {pipeline_mode = #tpu.pipeline_mode<synchronous>, transform_indices = @transform_2, window_bounds = array<i64: 2, 32>}, {pipeline_mode = #tpu.pipeline_mode<synchronous>, transform_indices = @transform_3, window_bounds = array<i64: 2, 32, 32>}, {pipeline_mode = #tpu.pipeline_mode<synchronous>, transform_indices = @transform_4, window_bounds = array<i64: 2, 32, 32>}, {pipeline_mode = #tpu.pipeline_mode<synchronous>, transform_indices = @transform_5, window_bounds = array<i64: 2, 32, 32>}, {pipeline_mode = #tpu.pipeline_mode<synchronous>, transform_indices = @transform_6, window_bounds = array<i64: 2, 4, 8, 32>}, {pipeline_mode = #tpu.pipeline_mode<synchronous>, transform_indices = @transform_7, window_bounds = array<i64: 2, 32>}, {pipeline_mode = #tpu.pipeline_mode<synchronous>, transform_indices = @transform_8, window_bounds = array<i64: 2, 32>}, {pipeline_mode = #tpu.pipeline_mode<synchronous>, transform_indices = @transform_9, window_bounds = array<i64: 2, 32>}, {pipeline_mode = #tpu.pipeline_mode<synchronous>, transform_indices = @transform_10, window_bounds = array<i64: 2, 32, 128>}, {pipeline_mode = #tpu.pipeline_mode<synchronous>, transform_indices = @transform_11, window_bounds = array<i64: 2, 128>}, {pipeline_mode = #tpu.pipeline_mode<synchronous>, transform_indices = @transform_12, window_bounds = array<i64: 2, 128, 32>}, {pipeline_mode = #tpu.pipeline_mode<synchronous>, transform_indices = @transform_13, window_bounds = array<i64: 2, 32>}, {transform_indices = @transform_14, window_bounds = array<i64: 1, 8, 32>}]} {
    %c0 = arith.constant 0 : index
    %c0_0 = arith.constant 0 : index
    %c0_1 = arith.constant 0 : index
    %0 = vector.load %arg1[%c0, %c0_0, %c0_1] : memref<1x8x32xf32, #tpu.memory_space<vmem>>, vector<1x8x32xf32>
    %1 = vector.shape_cast %0 : vector<1x8x32xf32> to vector<8x32xf32>
    %cst = arith.constant 0.000000e+00 : f32
    %2 = vector.broadcast %cst : f32 to vector<8x32xf32>
    %c0_2 = arith.constant 0 : index
    %c0_3 = arith.constant 0 : index
    %3 = vector.load %arg2[%c0_2, %c0_3] : memref<2x32xf32, #tpu.memory_space<vmem>>, vector<1x32xf32>
    %c0_4 = arith.constant 0 : index
    %c0_5 = arith.constant 0 : index
    %4 = vector.load %arg3[%c0_4, %c0_5] : memref<2x32xf32, #tpu.memory_space<vmem>>, vector<1x32xf32>
    %cst_6 = arith.constant dense<0.000000e+00> : vector<8xf32>
    %5 = vector.multi_reduction <add>, %1, %cst_6 [1] : vector<8x32xf32> to vector<8xf32>
    %6 = vector.shape_cast %5 : vector<8xf32> to vector<8x1xf32>
    %cst_7 = arith.constant 3.200000e+01 : f32
    %7 = vector.broadcast %cst_7 : f32 to vector<8x1xf32>
    %8 = arith.divf %6, %7 : vector<8x1xf32>
    %9 = vector.broadcast %8 : vector<8x1xf32> to vector<8x32xf32>
    %10 = arith.subf %1, %9 : vector<8x32xf32>
    %11 = arith.mulf %10, %10 : vector<8x32xf32>
    %cst_8 = arith.constant dense<0.000000e+00> : vector<8xf32>
    %12 = vector.multi_reduction <add>, %11, %cst_8 [1] : vector<8x32xf32> to vector<8xf32>
    %13 = vector.shape_cast %12 : vector<8xf32> to vector<8x1xf32>
    %cst_9 = arith.constant 3.200000e+01 : f32
    %14 = vector.broadcast %cst_9 : f32 to vector<8x1xf32>
    %15 = arith.divf %13, %14 : vector<8x1xf32>
    %16 = vector.broadcast %8 : vector<8x1xf32> to vector<8x32xf32>
    %17 = arith.subf %1, %16 : vector<8x32xf32>
    %cst_10 = arith.constant 9.99999974E-6 : f32
    %18 = vector.broadcast %cst_10 : f32 to vector<8x1xf32>
    %19 = arith.addf %15, %18 : vector<8x1xf32>
    %20 = math.rsqrt %19 : vector<8x1xf32>
    %21 = vector.broadcast %20 : vector<8x1xf32> to vector<8x32xf32>
    %22 = arith.mulf %17, %21 : vector<8x32xf32>
    %23 = vector.broadcast %3 : vector<1x32xf32> to vector<8x32xf32>
    %24 = arith.mulf %22, %23 : vector<8x32xf32>
    %25 = vector.broadcast %4 : vector<1x32xf32> to vector<8x32xf32>
    %26 = arith.addf %24, %25 : vector<8x32xf32>
    %27 = arith.truncf %26 : vector<8x32xf32> to vector<8x32xbf16>
    %c0_11 = arith.constant 0 : index
    %c0_12 = arith.constant 0 : index
    %c0_13 = arith.constant 0 : index
    %28 = vector.load %arg4[%c0_11, %c0_12, %c0_13] : memref<2x32x32xbf16, #tpu.memory_space<vmem>>, vector<1x32x32xbf16>
    %29 = vector.shape_cast %28 : vector<1x32x32xbf16> to vector<32x32xbf16>
    %cst_14 = arith.constant dense<0.000000e+00> : vector<8x32xf32>
    %30 = tpu.matmul %27, %29, %cst_14 {dimension_numbers = #tpu.dot_dimension_numbers<[1], [0], [0], [1], [0, 0, 1, 1], [], []>} : vector<8x32xbf16>, vector<32x32xbf16>, vector<8x32xf32> -> vector<8x32xf32>
    %c0_15 = arith.constant 0 : index
    %c0_16 = arith.constant 0 : index
    %c0_17 = arith.constant 0 : index
    %31 = vector.load %arg5[%c0_15, %c0_16, %c0_17] : memref<2x32x32xbf16, #tpu.memory_space<vmem>>, vector<1x32x32xbf16>
    %32 = vector.shape_cast %31 : vector<1x32x32xbf16> to vector<32x32xbf16>
    %cst_18 = arith.constant dense<0.000000e+00> : vector<8x32xf32>
    %33 = tpu.matmul %27, %32, %cst_18 {dimension_numbers = #tpu.dot_dimension_numbers<[1], [0], [0], [1], [0, 0, 1, 1], [], []>} : vector<8x32xbf16>, vector<32x32xbf16>, vector<8x32xf32> -> vector<8x32xf32>
    %c0_19 = arith.constant 0 : index
    %c0_20 = arith.constant 0 : index
    %c0_21 = arith.constant 0 : index
    %34 = vector.load %arg6[%c0_19, %c0_20, %c0_21] : memref<2x32x32xbf16, #tpu.memory_space<vmem>>, vector<1x32x32xbf16>
    %35 = vector.shape_cast %34 : vector<1x32x32xbf16> to vector<32x32xbf16>
    %cst_22 = arith.constant dense<0.000000e+00> : vector<8x32xf32>
    %36 = tpu.matmul %27, %35, %cst_22 {dimension_numbers = #tpu.dot_dimension_numbers<[1], [0], [0], [1], [0, 0, 1, 1], [], []>} : vector<8x32xbf16>, vector<32x32xbf16>, vector<8x32xf32> -> vector<8x32xf32>
    %37 = vector.extract_strided_slice %30 {offsets = [0, 0], sizes = [8, 8], strides = [1, 1]} : vector<8x32xf32> to vector<8x8xf32>
    %38 = arith.truncf %37 : vector<8x8xf32> to vector<8x8xbf16>
    %39 = vector.extract_strided_slice %33 {offsets = [0, 0], sizes = [8, 8], strides = [1, 1]} : vector<8x32xf32> to vector<8x8xf32>
    %40 = arith.truncf %39 : vector<8x8xf32> to vector<8x8xbf16>
    %41 = vector.extract_strided_slice %36 {offsets = [0, 0], sizes = [8, 8], strides = [1, 1]} : vector<8x32xf32> to vector<8x8xf32>
    %42 = arith.truncf %41 : vector<8x8xf32> to vector<8x8xbf16>
    %cst_23 = arith.constant dense<0.000000e+00> : vector<8x8xf32>
    %43 = tpu.matmul %38, %40, %cst_23 {dimension_numbers = #tpu.dot_dimension_numbers<[1], [1], [0], [0], [0, 0, 1, 0], [], []>} : vector<8x8xbf16>, vector<8x8xbf16>, vector<8x8xf32> -> vector<8x8xf32>
    %cst_24 = arith.constant dense<0xFF800000> : vector<8xf32>
    %44 = vector.multi_reduction <maximumf>, %43, %cst_24 [1] : vector<8x8xf32> to vector<8xf32>
    %45 = vector.shape_cast %44 : vector<8xf32> to vector<8x1xf32>
    %46 = vector.broadcast %45 : vector<8x1xf32> to vector<8x8xf32>
    %47 = arith.subf %43, %46 : vector<8x8xf32>
    %48 = math.exp %47 : vector<8x8xf32>
    %cst_25 = arith.constant dense<0.000000e+00> : vector<8xf32>
    %49 = vector.multi_reduction <add>, %48, %cst_25 [1] : vector<8x8xf32> to vector<8xf32>
    %50 = vector.shape_cast %49 : vector<8xf32> to vector<8x1xf32>
    %51 = tpu.reciprocal %50 {approx = true} : vector<8x1xf32> -> vector<8x1xf32>
    %52 = vector.broadcast %51 : vector<8x1xf32> to vector<8x8xf32>
    %53 = arith.mulf %48, %52 : vector<8x8xf32>
    %54 = arith.truncf %53 : vector<8x8xf32> to vector<8x8xbf16>
    %cst_26 = arith.constant dense<0.000000e+00> : vector<8x8xf32>
    %55 = tpu.matmul %54, %42, %cst_26 {dimension_numbers = #tpu.dot_dimension_numbers<[1], [0], [0], [1], [0, 0, 1, 1], [], []>} : vector<8x8xbf16>, vector<8x8xbf16>, vector<8x8xf32> -> vector<8x8xf32>
    %56 = arith.truncf %55 : vector<8x8xf32> to vector<8x8xbf16>
    %c0_27 = arith.constant 0 : index
    %c0_28 = arith.constant 0 : index
    %c0_29 = arith.constant 0 : index
    %c0_30 = arith.constant 0 : index
    %57 = vector.load %arg7[%c0_27, %c0_28, %c0_29, %c0_30] : memref<2x4x8x32xbf16, #tpu.memory_space<vmem>>, vector<1x1x8x32xbf16>
    %58 = vector.shape_cast %57 : vector<1x1x8x32xbf16> to vector<8x32xbf16>
    %cst_31 = arith.constant dense<0.000000e+00> : vector<8x32xf32>
    %59 = tpu.matmul %56, %58, %cst_31 {dimension_numbers = #tpu.dot_dimension_numbers<[1], [0], [0], [1], [0, 0, 1, 1], [], []>} : vector<8x8xbf16>, vector<8x32xbf16>, vector<8x32xf32> -> vector<8x32xf32>
    %60 = arith.addf %2, %59 : vector<8x32xf32>
    %61 = vector.extract_strided_slice %30 {offsets = [0, 8], sizes = [8, 8], strides = [1, 1]} : vector<8x32xf32> to vector<8x8xf32>
    %62 = arith.truncf %61 : vector<8x8xf32> to vector<8x8xbf16>
    %63 = vector.extract_strided_slice %33 {offsets = [0, 8], sizes = [8, 8], strides = [1, 1]} : vector<8x32xf32> to vector<8x8xf32>
    %64 = arith.truncf %63 : vector<8x8xf32> to vector<8x8xbf16>
    %65 = vector.extract_strided_slice %36 {offsets = [0, 8], sizes = [8, 8], strides = [1, 1]} : vector<8x32xf32> to vector<8x8xf32>
    %66 = arith.truncf %65 : vector<8x8xf32> to vector<8x8xbf16>
    %cst_32 = arith.constant dense<0.000000e+00> : vector<8x8xf32>
    %67 = tpu.matmul %62, %64, %cst_32 {dimension_numbers = #tpu.dot_dimension_numbers<[1], [1], [0], [0], [0, 0, 1, 0], [], []>} : vector<8x8xbf16>, vector<8x8xbf16>, vector<8x8xf32> -> vector<8x8xf32>
    %cst_33 = arith.constant dense<0xFF800000> : vector<8xf32>
    %68 = vector.multi_reduction <maximumf>, %67, %cst_33 [1] : vector<8x8xf32> to vector<8xf32>
    %69 = vector.shape_cast %68 : vector<8xf32> to vector<8x1xf32>
    %70 = vector.broadcast %69 : vector<8x1xf32> to vector<8x8xf32>
    %71 = arith.subf %67, %70 : vector<8x8xf32>
    %72 = math.exp %71 : vector<8x8xf32>
    %cst_34 = arith.constant dense<0.000000e+00> : vector<8xf32>
    %73 = vector.multi_reduction <add>, %72, %cst_34 [1] : vector<8x8xf32> to vector<8xf32>
    %74 = vector.shape_cast %73 : vector<8xf32> to vector<8x1xf32>
    %75 = tpu.reciprocal %74 {approx = true} : vector<8x1xf32> -> vector<8x1xf32>
    %76 = vector.broadcast %75 : vector<8x1xf32> to vector<8x8xf32>
    %77 = arith.mulf %72, %76 : vector<8x8xf32>
    %78 = arith.truncf %77 : vector<8x8xf32> to vector<8x8xbf16>
    %cst_35 = arith.constant dense<0.000000e+00> : vector<8x8xf32>
    %79 = tpu.matmul %78, %66, %cst_35 {dimension_numbers = #tpu.dot_dimension_numbers<[1], [0], [0], [1], [0, 0, 1, 1], [], []>} : vector<8x8xbf16>, vector<8x8xbf16>, vector<8x8xf32> -> vector<8x8xf32>
    %80 = arith.truncf %79 : vector<8x8xf32> to vector<8x8xbf16>
    %c0_36 = arith.constant 0 : index
    %c1 = arith.constant 1 : index
    %c0_37 = arith.constant 0 : index
    %c0_38 = arith.constant 0 : index
    %81 = vector.load %arg7[%c0_36, %c1, %c0_37, %c0_38] : memref<2x4x8x32xbf16, #tpu.memory_space<vmem>>, vector<1x1x8x32xbf16>
    %82 = vector.shape_cast %81 : vector<1x1x8x32xbf16> to vector<8x32xbf16>
    %cst_39 = arith.constant dense<0.000000e+00> : vector<8x32xf32>
    %83 = tpu.matmul %80, %82, %cst_39 {dimension_numbers = #tpu.dot_dimension_numbers<[1], [0], [0], [1], [0, 0, 1, 1], [], []>} : vector<8x8xbf16>, vector<8x32xbf16>, vector<8x32xf32> -> vector<8x32xf32>
    %84 = arith.addf %60, %83 : vector<8x32xf32>
    %85 = vector.extract_strided_slice %30 {offsets = [0, 16], sizes = [8, 8], strides = [1, 1]} : vector<8x32xf32> to vector<8x8xf32>
    %86 = arith.truncf %85 : vector<8x8xf32> to vector<8x8xbf16>
    %87 = vector.extract_strided_slice %33 {offsets = [0, 16], sizes = [8, 8], strides = [1, 1]} : vector<8x32xf32> to vector<8x8xf32>
    %88 = arith.truncf %87 : vector<8x8xf32> to vector<8x8xbf16>
    %89 = vector.extract_strided_slice %36 {offsets = [0, 16], sizes = [8, 8], strides = [1, 1]} : vector<8x32xf32> to vector<8x8xf32>
    %90 = arith.truncf %89 : vector<8x8xf32> to vector<8x8xbf16>
    %cst_40 = arith.constant dense<0.000000e+00> : vector<8x8xf32>
    %91 = tpu.matmul %86, %88, %cst_40 {dimension_numbers = #tpu.dot_dimension_numbers<[1], [1], [0], [0], [0, 0, 1, 0], [], []>} : vector<8x8xbf16>, vector<8x8xbf16>, vector<8x8xf32> -> vector<8x8xf32>
    %cst_41 = arith.constant dense<0xFF800000> : vector<8xf32>
    %92 = vector.multi_reduction <maximumf>, %91, %cst_41 [1] : vector<8x8xf32> to vector<8xf32>
    %93 = vector.shape_cast %92 : vector<8xf32> to vector<8x1xf32>
    %94 = vector.broadcast %93 : vector<8x1xf32> to vector<8x8xf32>
    %95 = arith.subf %91, %94 : vector<8x8xf32>
    %96 = math.exp %95 : vector<8x8xf32>
    %cst_42 = arith.constant dense<0.000000e+00> : vector<8xf32>
    %97 = vector.multi_reduction <add>, %96, %cst_42 [1] : vector<8x8xf32> to vector<8xf32>
    %98 = vector.shape_cast %97 : vector<8xf32> to vector<8x1xf32>
    %99 = tpu.reciprocal %98 {approx = true} : vector<8x1xf32> -> vector<8x1xf32>
    %100 = vector.broadcast %99 : vector<8x1xf32> to vector<8x8xf32>
    %101 = arith.mulf %96, %100 : vector<8x8xf32>
    %102 = arith.truncf %101 : vector<8x8xf32> to vector<8x8xbf16>
    %cst_43 = arith.constant dense<0.000000e+00> : vector<8x8xf32>
    %103 = tpu.matmul %102, %90, %cst_43 {dimension_numbers = #tpu.dot_dimension_numbers<[1], [0], [0], [1], [0, 0, 1, 1], [], []>} : vector<8x8xbf16>, vector<8x8xbf16>, vector<8x8xf32> -> vector<8x8xf32>
    %104 = arith.truncf %103 : vector<8x8xf32> to vector<8x8xbf16>
    %c0_44 = arith.constant 0 : index
    %c2 = arith.constant 2 : index
    %c0_45 = arith.constant 0 : index
    %c0_46 = arith.constant 0 : index
    %105 = vector.load %arg7[%c0_44, %c2, %c0_45, %c0_46] : memref<2x4x8x32xbf16, #tpu.memory_space<vmem>>, vector<1x1x8x32xbf16>
    %106 = vector.shape_cast %105 : vector<1x1x8x32xbf16> to vector<8x32xbf16>
    %cst_47 = arith.constant dense<0.000000e+00> : vector<8x32xf32>
    %107 = tpu.matmul %104, %106, %cst_47 {dimension_numbers = #tpu.dot_dimension_numbers<[1], [0], [0], [1], [0, 0, 1, 1], [], []>} : vector<8x8xbf16>, vector<8x32xbf16>, vector<8x32xf32> -> vector<8x32xf32>
    %108 = arith.addf %84, %107 : vector<8x32xf32>
    %109 = vector.extract_strided_slice %30 {offsets = [0, 24], sizes = [8, 8], strides = [1, 1]} : vector<8x32xf32> to vector<8x8xf32>
    %110 = arith.truncf %109 : vector<8x8xf32> to vector<8x8xbf16>
    %111 = vector.extract_strided_slice %33 {offsets = [0, 24], sizes = [8, 8], strides = [1, 1]} : vector<8x32xf32> to vector<8x8xf32>
    %112 = arith.truncf %111 : vector<8x8xf32> to vector<8x8xbf16>
    %113 = vector.extract_strided_slice %36 {offsets = [0, 24], sizes = [8, 8], strides = [1, 1]} : vector<8x32xf32> to vector<8x8xf32>
    %114 = arith.truncf %113 : vector<8x8xf32> to vector<8x8xbf16>
    %cst_48 = arith.constant dense<0.000000e+00> : vector<8x8xf32>
    %115 = tpu.matmul %110, %112, %cst_48 {dimension_numbers = #tpu.dot_dimension_numbers<[1], [1], [0], [0], [0, 0, 1, 0], [], []>} : vector<8x8xbf16>, vector<8x8xbf16>, vector<8x8xf32> -> vector<8x8xf32>
    %cst_49 = arith.constant dense<0xFF800000> : vector<8xf32>
    %116 = vector.multi_reduction <maximumf>, %115, %cst_49 [1] : vector<8x8xf32> to vector<8xf32>
    %117 = vector.shape_cast %116 : vector<8xf32> to vector<8x1xf32>
    %118 = vector.broadcast %117 : vector<8x1xf32> to vector<8x8xf32>
    %119 = arith.subf %115, %118 : vector<8x8xf32>
    %120 = math.exp %119 : vector<8x8xf32>
    %cst_50 = arith.constant dense<0.000000e+00> : vector<8xf32>
    %121 = vector.multi_reduction <add>, %120, %cst_50 [1] : vector<8x8xf32> to vector<8xf32>
    %122 = vector.shape_cast %121 : vector<8xf32> to vector<8x1xf32>
    %123 = tpu.reciprocal %122 {approx = true} : vector<8x1xf32> -> vector<8x1xf32>
    %124 = vector.broadcast %123 : vector<8x1xf32> to vector<8x8xf32>
    %125 = arith.mulf %120, %124 : vector<8x8xf32>
    %126 = arith.truncf %125 : vector<8x8xf32> to vector<8x8xbf16>
    %cst_51 = arith.constant dense<0.000000e+00> : vector<8x8xf32>
    %127 = tpu.matmul %126, %114, %cst_51 {dimension_numbers = #tpu.dot_dimension_numbers<[1], [0], [0], [1], [0, 0, 1, 1], [], []>} : vector<8x8xbf16>, vector<8x8xbf16>, vector<8x8xf32> -> vector<8x8xf32>
    %128 = arith.truncf %127 : vector<8x8xf32> to vector<8x8xbf16>
    %c0_52 = arith.constant 0 : index
    %c3 = arith.constant 3 : index
    %c0_53 = arith.constant 0 : index
    %c0_54 = arith.constant 0 : index
    %129 = vector.load %arg7[%c0_52, %c3, %c0_53, %c0_54] : memref<2x4x8x32xbf16, #tpu.memory_space<vmem>>, vector<1x1x8x32xbf16>
    %130 = vector.shape_cast %129 : vector<1x1x8x32xbf16> to vector<8x32xbf16>
    %cst_55 = arith.constant dense<0.000000e+00> : vector<8x32xf32>
    %131 = tpu.matmul %128, %130, %cst_55 {dimension_numbers = #tpu.dot_dimension_numbers<[1], [0], [0], [1], [0, 0, 1, 1], [], []>} : vector<8x8xbf16>, vector<8x32xbf16>, vector<8x32xf32> -> vector<8x32xf32>
    %132 = arith.addf %108, %131 : vector<8x32xf32>
    %c0_56 = arith.constant 0 : index
    %c0_57 = arith.constant 0 : index
    %133 = vector.load %arg8[%c0_56, %c0_57] : memref<2x32xf32, #tpu.memory_space<vmem>>, vector<1x32xf32>
    %134 = vector.broadcast %133 : vector<1x32xf32> to vector<8x32xf32>
    %135 = arith.addf %132, %134 : vector<8x32xf32>
    %c1_58 = arith.constant 1 : index
    %c0_59 = arith.constant 0 : index
    %136 = vector.load %arg2[%c1_58, %c0_59] : memref<2x32xf32, #tpu.memory_space<vmem>>, vector<1x32xf32>
    %c1_60 = arith.constant 1 : index
    %c0_61 = arith.constant 0 : index
    %137 = vector.load %arg3[%c1_60, %c0_61] : memref<2x32xf32, #tpu.memory_space<vmem>>, vector<1x32xf32>
    %cst_62 = arith.constant dense<0.000000e+00> : vector<8xf32>
    %138 = vector.multi_reduction <add>, %1, %cst_62 [1] : vector<8x32xf32> to vector<8xf32>
    %139 = vector.shape_cast %138 : vector<8xf32> to vector<8x1xf32>
    %cst_63 = arith.constant 3.200000e+01 : f32
    %140 = vector.broadcast %cst_63 : f32 to vector<8x1xf32>
    %141 = arith.divf %139, %140 : vector<8x1xf32>
    %142 = vector.broadcast %141 : vector<8x1xf32> to vector<8x32xf32>
    %143 = arith.subf %1, %142 : vector<8x32xf32>
    %144 = arith.mulf %143, %143 : vector<8x32xf32>
    %cst_64 = arith.constant dense<0.000000e+00> : vector<8xf32>
    %145 = vector.multi_reduction <add>, %144, %cst_64 [1] : vector<8x32xf32> to vector<8xf32>
    %146 = vector.shape_cast %145 : vector<8xf32> to vector<8x1xf32>
    %cst_65 = arith.constant 3.200000e+01 : f32
    %147 = vector.broadcast %cst_65 : f32 to vector<8x1xf32>
    %148 = arith.divf %146, %147 : vector<8x1xf32>
    %149 = vector.broadcast %141 : vector<8x1xf32> to vector<8x32xf32>
    %150 = arith.subf %1, %149 : vector<8x32xf32>
    %cst_66 = arith.constant 9.99999974E-6 : f32
    %151 = vector.broadcast %cst_66 : f32 to vector<8x1xf32>
    %152 = arith.addf %148, %151 : vector<8x1xf32>
    %153 = math.rsqrt %152 : vector<8x1xf32>
    %154 = vector.broadcast %153 : vector<8x1xf32> to vector<8x32xf32>
    %155 = arith.mulf %150, %154 : vector<8x32xf32>
    %156 = vector.broadcast %136 : vector<1x32xf32> to vector<8x32xf32>
    %157 = arith.mulf %155, %156 : vector<8x32xf32>
    %158 = vector.broadcast %137 : vector<1x32xf32> to vector<8x32xf32>
    %159 = arith.addf %157, %158 : vector<8x32xf32>
    %160 = arith.truncf %159 : vector<8x32xf32> to vector<8x32xbf16>
    %c1_67 = arith.constant 1 : index
    %c0_68 = arith.constant 0 : index
    %c0_69 = arith.constant 0 : index
    %161 = vector.load %arg4[%c1_67, %c0_68, %c0_69] : memref<2x32x32xbf16, #tpu.memory_space<vmem>>, vector<1x32x32xbf16>
    %162 = vector.shape_cast %161 : vector<1x32x32xbf16> to vector<32x32xbf16>
    %cst_70 = arith.constant dense<0.000000e+00> : vector<8x32xf32>
    %163 = tpu.matmul %160, %162, %cst_70 {dimension_numbers = #tpu.dot_dimension_numbers<[1], [0], [0], [1], [0, 0, 1, 1], [], []>} : vector<8x32xbf16>, vector<32x32xbf16>, vector<8x32xf32> -> vector<8x32xf32>
    %c1_71 = arith.constant 1 : index
    %c0_72 = arith.constant 0 : index
    %c0_73 = arith.constant 0 : index
    %164 = vector.load %arg5[%c1_71, %c0_72, %c0_73] : memref<2x32x32xbf16, #tpu.memory_space<vmem>>, vector<1x32x32xbf16>
    %165 = vector.shape_cast %164 : vector<1x32x32xbf16> to vector<32x32xbf16>
    %cst_74 = arith.constant dense<0.000000e+00> : vector<8x32xf32>
    %166 = tpu.matmul %160, %165, %cst_74 {dimension_numbers = #tpu.dot_dimension_numbers<[1], [0], [0], [1], [0, 0, 1, 1], [], []>} : vector<8x32xbf16>, vector<32x32xbf16>, vector<8x32xf32> -> vector<8x32xf32>
    %c1_75 = arith.constant 1 : index
    %c0_76 = arith.constant 0 : index
    %c0_77 = arith.constant 0 : index
    %167 = vector.load %arg6[%c1_75, %c0_76, %c0_77] : memref<2x32x32xbf16, #tpu.memory_space<vmem>>, vector<1x32x32xbf16>
    %168 = vector.shape_cast %167 : vector<1x32x32xbf16> to vector<32x32xbf16>
    %cst_78 = arith.constant dense<0.000000e+00> : vector<8x32xf32>
    %169 = tpu.matmul %160, %168, %cst_78 {dimension_numbers = #tpu.dot_dimension_numbers<[1], [0], [0], [1], [0, 0, 1, 1], [], []>} : vector<8x32xbf16>, vector<32x32xbf16>, vector<8x32xf32> -> vector<8x32xf32>
    %170 = vector.extract_strided_slice %163 {offsets = [0, 0], sizes = [8, 8], strides = [1, 1]} : vector<8x32xf32> to vector<8x8xf32>
    %171 = arith.truncf %170 : vector<8x8xf32> to vector<8x8xbf16>
    %172 = vector.extract_strided_slice %166 {offsets = [0, 0], sizes = [8, 8], strides = [1, 1]} : vector<8x32xf32> to vector<8x8xf32>
    %173 = arith.truncf %172 : vector<8x8xf32> to vector<8x8xbf16>
    %174 = vector.extract_strided_slice %169 {offsets = [0, 0], sizes = [8, 8], strides = [1, 1]} : vector<8x32xf32> to vector<8x8xf32>
    %175 = arith.truncf %174 : vector<8x8xf32> to vector<8x8xbf16>
    %cst_79 = arith.constant dense<0.000000e+00> : vector<8x8xf32>
    %176 = tpu.matmul %171, %173, %cst_79 {dimension_numbers = #tpu.dot_dimension_numbers<[1], [1], [0], [0], [0, 0, 1, 0], [], []>} : vector<8x8xbf16>, vector<8x8xbf16>, vector<8x8xf32> -> vector<8x8xf32>
    %cst_80 = arith.constant dense<0xFF800000> : vector<8xf32>
    %177 = vector.multi_reduction <maximumf>, %176, %cst_80 [1] : vector<8x8xf32> to vector<8xf32>
    %178 = vector.shape_cast %177 : vector<8xf32> to vector<8x1xf32>
    %179 = vector.broadcast %178 : vector<8x1xf32> to vector<8x8xf32>
    %180 = arith.subf %176, %179 : vector<8x8xf32>
    %181 = math.exp %180 : vector<8x8xf32>
    %cst_81 = arith.constant dense<0.000000e+00> : vector<8xf32>
    %182 = vector.multi_reduction <add>, %181, %cst_81 [1] : vector<8x8xf32> to vector<8xf32>
    %183 = vector.shape_cast %182 : vector<8xf32> to vector<8x1xf32>
    %184 = tpu.reciprocal %183 {approx = true} : vector<8x1xf32> -> vector<8x1xf32>
    %185 = vector.broadcast %184 : vector<8x1xf32> to vector<8x8xf32>
    %186 = arith.mulf %181, %185 : vector<8x8xf32>
    %187 = arith.truncf %186 : vector<8x8xf32> to vector<8x8xbf16>
    %cst_82 = arith.constant dense<0.000000e+00> : vector<8x8xf32>
    %188 = tpu.matmul %187, %175, %cst_82 {dimension_numbers = #tpu.dot_dimension_numbers<[1], [0], [0], [1], [0, 0, 1, 1], [], []>} : vector<8x8xbf16>, vector<8x8xbf16>, vector<8x8xf32> -> vector<8x8xf32>
    %189 = arith.truncf %188 : vector<8x8xf32> to vector<8x8xbf16>
    %c1_83 = arith.constant 1 : index
    %c0_84 = arith.constant 0 : index
    %c0_85 = arith.constant 0 : index
    %c0_86 = arith.constant 0 : index
    %190 = vector.load %arg7[%c1_83, %c0_84, %c0_85, %c0_86] : memref<2x4x8x32xbf16, #tpu.memory_space<vmem>>, vector<1x1x8x32xbf16>
    %191 = vector.shape_cast %190 : vector<1x1x8x32xbf16> to vector<8x32xbf16>
    %cst_87 = arith.constant dense<0.000000e+00> : vector<8x32xf32>
    %192 = tpu.matmul %189, %191, %cst_87 {dimension_numbers = #tpu.dot_dimension_numbers<[1], [0], [0], [1], [0, 0, 1, 1], [], []>} : vector<8x8xbf16>, vector<8x32xbf16>, vector<8x32xf32> -> vector<8x32xf32>
    %193 = arith.addf %135, %192 : vector<8x32xf32>
    %194 = vector.extract_strided_slice %163 {offsets = [0, 8], sizes = [8, 8], strides = [1, 1]} : vector<8x32xf32> to vector<8x8xf32>
    %195 = arith.truncf %194 : vector<8x8xf32> to vector<8x8xbf16>
    %196 = vector.extract_strided_slice %166 {offsets = [0, 8], sizes = [8, 8], strides = [1, 1]} : vector<8x32xf32> to vector<8x8xf32>
    %197 = arith.truncf %196 : vector<8x8xf32> to vector<8x8xbf16>
    %198 = vector.extract_strided_slice %169 {offsets = [0, 8], sizes = [8, 8], strides = [1, 1]} : vector<8x32xf32> to vector<8x8xf32>
    %199 = arith.truncf %198 : vector<8x8xf32> to vector<8x8xbf16>
    %cst_88 = arith.constant dense<0.000000e+00> : vector<8x8xf32>
    %200 = tpu.matmul %195, %197, %cst_88 {dimension_numbers = #tpu.dot_dimension_numbers<[1], [1], [0], [0], [0, 0, 1, 0], [], []>} : vector<8x8xbf16>, vector<8x8xbf16>, vector<8x8xf32> -> vector<8x8xf32>
    %cst_89 = arith.constant dense<0xFF800000> : vector<8xf32>
    %201 = vector.multi_reduction <maximumf>, %200, %cst_89 [1] : vector<8x8xf32> to vector<8xf32>
    %202 = vector.shape_cast %201 : vector<8xf32> to vector<8x1xf32>
    %203 = vector.broadcast %202 : vector<8x1xf32> to vector<8x8xf32>
    %204 = arith.subf %200, %203 : vector<8x8xf32>
    %205 = math.exp %204 : vector<8x8xf32>
    %cst_90 = arith.constant dense<0.000000e+00> : vector<8xf32>
    %206 = vector.multi_reduction <add>, %205, %cst_90 [1] : vector<8x8xf32> to vector<8xf32>
    %207 = vector.shape_cast %206 : vector<8xf32> to vector<8x1xf32>
    %208 = tpu.reciprocal %207 {approx = true} : vector<8x1xf32> -> vector<8x1xf32>
    %209 = vector.broadcast %208 : vector<8x1xf32> to vector<8x8xf32>
    %210 = arith.mulf %205, %209 : vector<8x8xf32>
    %211 = arith.truncf %210 : vector<8x8xf32> to vector<8x8xbf16>
    %cst_91 = arith.constant dense<0.000000e+00> : vector<8x8xf32>
    %212 = tpu.matmul %211, %199, %cst_91 {dimension_numbers = #tpu.dot_dimension_numbers<[1], [0], [0], [1], [0, 0, 1, 1], [], []>} : vector<8x8xbf16>, vector<8x8xbf16>, vector<8x8xf32> -> vector<8x8xf32>
    %213 = arith.truncf %212 : vector<8x8xf32> to vector<8x8xbf16>
    %c1_92 = arith.constant 1 : index
    %c1_93 = arith.constant 1 : index
    %c0_94 = arith.constant 0 : index
    %c0_95 = arith.constant 0 : index
    %214 = vector.load %arg7[%c1_92, %c1_93, %c0_94, %c0_95] : memref<2x4x8x32xbf16, #tpu.memory_space<vmem>>, vector<1x1x8x32xbf16>
    %215 = vector.shape_cast %214 : vector<1x1x8x32xbf16> to vector<8x32xbf16>
    %cst_96 = arith.constant dense<0.000000e+00> : vector<8x32xf32>
    %216 = tpu.matmul %213, %215, %cst_96 {dimension_numbers = #tpu.dot_dimension_numbers<[1], [0], [0], [1], [0, 0, 1, 1], [], []>} : vector<8x8xbf16>, vector<8x32xbf16>, vector<8x32xf32> -> vector<8x32xf32>
    %217 = arith.addf %193, %216 : vector<8x32xf32>
    %218 = vector.extract_strided_slice %163 {offsets = [0, 16], sizes = [8, 8], strides = [1, 1]} : vector<8x32xf32> to vector<8x8xf32>
    %219 = arith.truncf %218 : vector<8x8xf32> to vector<8x8xbf16>
    %220 = vector.extract_strided_slice %166 {offsets = [0, 16], sizes = [8, 8], strides = [1, 1]} : vector<8x32xf32> to vector<8x8xf32>
    %221 = arith.truncf %220 : vector<8x8xf32> to vector<8x8xbf16>
    %222 = vector.extract_strided_slice %169 {offsets = [0, 16], sizes = [8, 8], strides = [1, 1]} : vector<8x32xf32> to vector<8x8xf32>
    %223 = arith.truncf %222 : vector<8x8xf32> to vector<8x8xbf16>
    %cst_97 = arith.constant dense<0.000000e+00> : vector<8x8xf32>
    %224 = tpu.matmul %219, %221, %cst_97 {dimension_numbers = #tpu.dot_dimension_numbers<[1], [1], [0], [0], [0, 0, 1, 0], [], []>} : vector<8x8xbf16>, vector<8x8xbf16>, vector<8x8xf32> -> vector<8x8xf32>
    %cst_98 = arith.constant dense<0xFF800000> : vector<8xf32>
    %225 = vector.multi_reduction <maximumf>, %224, %cst_98 [1] : vector<8x8xf32> to vector<8xf32>
    %226 = vector.shape_cast %225 : vector<8xf32> to vector<8x1xf32>
    %227 = vector.broadcast %226 : vector<8x1xf32> to vector<8x8xf32>
    %228 = arith.subf %224, %227 : vector<8x8xf32>
    %229 = math.exp %228 : vector<8x8xf32>
    %cst_99 = arith.constant dense<0.000000e+00> : vector<8xf32>
    %230 = vector.multi_reduction <add>, %229, %cst_99 [1] : vector<8x8xf32> to vector<8xf32>
    %231 = vector.shape_cast %230 : vector<8xf32> to vector<8x1xf32>
    %232 = tpu.reciprocal %231 {approx = true} : vector<8x1xf32> -> vector<8x1xf32>
    %233 = vector.broadcast %232 : vector<8x1xf32> to vector<8x8xf32>
    %234 = arith.mulf %229, %233 : vector<8x8xf32>
    %235 = arith.truncf %234 : vector<8x8xf32> to vector<8x8xbf16>
    %cst_100 = arith.constant dense<0.000000e+00> : vector<8x8xf32>
    %236 = tpu.matmul %235, %223, %cst_100 {dimension_numbers = #tpu.dot_dimension_numbers<[1], [0], [0], [1], [0, 0, 1, 1], [], []>} : vector<8x8xbf16>, vector<8x8xbf16>, vector<8x8xf32> -> vector<8x8xf32>
    %237 = arith.truncf %236 : vector<8x8xf32> to vector<8x8xbf16>
    %c1_101 = arith.constant 1 : index
    %c2_102 = arith.constant 2 : index
    %c0_103 = arith.constant 0 : index
    %c0_104 = arith.constant 0 : index
    %238 = vector.load %arg7[%c1_101, %c2_102, %c0_103, %c0_104] : memref<2x4x8x32xbf16, #tpu.memory_space<vmem>>, vector<1x1x8x32xbf16>
    %239 = vector.shape_cast %238 : vector<1x1x8x32xbf16> to vector<8x32xbf16>
    %cst_105 = arith.constant dense<0.000000e+00> : vector<8x32xf32>
    %240 = tpu.matmul %237, %239, %cst_105 {dimension_numbers = #tpu.dot_dimension_numbers<[1], [0], [0], [1], [0, 0, 1, 1], [], []>} : vector<8x8xbf16>, vector<8x32xbf16>, vector<8x32xf32> -> vector<8x32xf32>
    %241 = arith.addf %217, %240 : vector<8x32xf32>
    %242 = vector.extract_strided_slice %163 {offsets = [0, 24], sizes = [8, 8], strides = [1, 1]} : vector<8x32xf32> to vector<8x8xf32>
    %243 = arith.truncf %242 : vector<8x8xf32> to vector<8x8xbf16>
    %244 = vector.extract_strided_slice %166 {offsets = [0, 24], sizes = [8, 8], strides = [1, 1]} : vector<8x32xf32> to vector<8x8xf32>
    %245 = arith.truncf %244 : vector<8x8xf32> to vector<8x8xbf16>
    %246 = vector.extract_strided_slice %169 {offsets = [0, 24], sizes = [8, 8], strides = [1, 1]} : vector<8x32xf32> to vector<8x8xf32>
    %247 = arith.truncf %246 : vector<8x8xf32> to vector<8x8xbf16>
    %cst_106 = arith.constant dense<0.000000e+00> : vector<8x8xf32>
    %248 = tpu.matmul %243, %245, %cst_106 {dimension_numbers = #tpu.dot_dimension_numbers<[1], [1], [0], [0], [0, 0, 1, 0], [], []>} : vector<8x8xbf16>, vector<8x8xbf16>, vector<8x8xf32> -> vector<8x8xf32>
    %cst_107 = arith.constant dense<0xFF800000> : vector<8xf32>
    %249 = vector.multi_reduction <maximumf>, %248, %cst_107 [1] : vector<8x8xf32> to vector<8xf32>
    %250 = vector.shape_cast %249 : vector<8xf32> to vector<8x1xf32>
    %251 = vector.broadcast %250 : vector<8x1xf32> to vector<8x8xf32>
    %252 = arith.subf %248, %251 : vector<8x8xf32>
    %253 = math.exp %252 : vector<8x8xf32>
    %cst_108 = arith.constant dense<0.000000e+00> : vector<8xf32>
    %254 = vector.multi_reduction <add>, %253, %cst_108 [1] : vector<8x8xf32> to vector<8xf32>
    %255 = vector.shape_cast %254 : vector<8xf32> to vector<8x1xf32>
    %256 = tpu.reciprocal %255 {approx = true} : vector<8x1xf32> -> vector<8x1xf32>
    %257 = vector.broadcast %256 : vector<8x1xf32> to vector<8x8xf32>
    %258 = arith.mulf %253, %257 : vector<8x8xf32>
    %259 = arith.truncf %258 : vector<8x8xf32> to vector<8x8xbf16>
    %cst_109 = arith.constant dense<0.000000e+00> : vector<8x8xf32>
    %260 = tpu.matmul %259, %247, %cst_109 {dimension_numbers = #tpu.dot_dimension_numbers<[1], [0], [0], [1], [0, 0, 1, 1], [], []>} : vector<8x8xbf16>, vector<8x8xbf16>, vector<8x8xf32> -> vector<8x8xf32>
    %261 = arith.truncf %260 : vector<8x8xf32> to vector<8x8xbf16>
    %c1_110 = arith.constant 1 : index
    %c3_111 = arith.constant 3 : index
    %c0_112 = arith.constant 0 : index
    %c0_113 = arith.constant 0 : index
    %262 = vector.load %arg7[%c1_110, %c3_111, %c0_112, %c0_113] : memref<2x4x8x32xbf16, #tpu.memory_space<vmem>>, vector<1x1x8x32xbf16>
    %263 = vector.shape_cast %262 : vector<1x1x8x32xbf16> to vector<8x32xbf16>
    %cst_114 = arith.constant dense<0.000000e+00> : vector<8x32xf32>
    %264 = tpu.matmul %261, %263, %cst_114 {dimension_numbers = #tpu.dot_dimension_numbers<[1], [0], [0], [1], [0, 0, 1, 1], [], []>} : vector<8x8xbf16>, vector<8x32xbf16>, vector<8x32xf32> -> vector<8x32xf32>
    %265 = arith.addf %241, %264 : vector<8x32xf32>
    %c1_115 = arith.constant 1 : index
    %c0_116 = arith.constant 0 : index
    %266 = vector.load %arg8[%c1_115, %c0_116] : memref<2x32xf32, #tpu.memory_space<vmem>>, vector<1x32xf32>
    %267 = vector.broadcast %266 : vector<1x32xf32> to vector<8x32xf32>
    %268 = arith.addf %265, %267 : vector<8x32xf32>
    %269 = arith.addf %1, %268 : vector<8x32xf32>
    %cst_117 = arith.constant 0.000000e+00 : f32
    %270 = vector.broadcast %cst_117 : f32 to vector<8x32xf32>
    %c0_118 = arith.constant 0 : index
    %c0_119 = arith.constant 0 : index
    %271 = vector.load %arg9[%c0_118, %c0_119] : memref<2x32xf32, #tpu.memory_space<vmem>>, vector<1x32xf32>
    %c0_120 = arith.constant 0 : index
    %c0_121 = arith.constant 0 : index
    %272 = vector.load %arg10[%c0_120, %c0_121] : memref<2x32xf32, #tpu.memory_space<vmem>>, vector<1x32xf32>
    %cst_122 = arith.constant dense<0.000000e+00> : vector<8xf32>
    %273 = vector.multi_reduction <add>, %269, %cst_122 [1] : vector<8x32xf32> to vector<8xf32>
    %274 = vector.shape_cast %273 : vector<8xf32> to vector<8x1xf32>
    %cst_123 = arith.constant 3.200000e+01 : f32
    %275 = vector.broadcast %cst_123 : f32 to vector<8x1xf32>
    %276 = arith.divf %274, %275 : vector<8x1xf32>
    %277 = vector.broadcast %276 : vector<8x1xf32> to vector<8x32xf32>
    %278 = arith.subf %269, %277 : vector<8x32xf32>
    %279 = arith.mulf %278, %278 : vector<8x32xf32>
    %cst_124 = arith.constant dense<0.000000e+00> : vector<8xf32>
    %280 = vector.multi_reduction <add>, %279, %cst_124 [1] : vector<8x32xf32> to vector<8xf32>
    %281 = vector.shape_cast %280 : vector<8xf32> to vector<8x1xf32>
    %cst_125 = arith.constant 3.200000e+01 : f32
    %282 = vector.broadcast %cst_125 : f32 to vector<8x1xf32>
    %283 = arith.divf %281, %282 : vector<8x1xf32>
    %284 = vector.broadcast %276 : vector<8x1xf32> to vector<8x32xf32>
    %285 = arith.subf %269, %284 : vector<8x32xf32>
    %cst_126 = arith.constant 9.99999974E-6 : f32
    %286 = vector.broadcast %cst_126 : f32 to vector<8x1xf32>
    %287 = arith.addf %283, %286 : vector<8x1xf32>
    %288 = math.rsqrt %287 : vector<8x1xf32>
    %289 = vector.broadcast %288 : vector<8x1xf32> to vector<8x32xf32>
    %290 = arith.mulf %285, %289 : vector<8x32xf32>
    %291 = vector.broadcast %271 : vector<1x32xf32> to vector<8x32xf32>
    %292 = arith.mulf %290, %291 : vector<8x32xf32>
    %293 = vector.broadcast %272 : vector<1x32xf32> to vector<8x32xf32>
    %294 = arith.addf %292, %293 : vector<8x32xf32>
    %295 = arith.truncf %294 : vector<8x32xf32> to vector<8x32xbf16>
    %c0_127 = arith.constant 0 : index
    %c0_128 = arith.constant 0 : index
    %c0_129 = arith.constant 0 : index
    %296 = vector.load %arg11[%c0_127, %c0_128, %c0_129] : memref<2x32x128xbf16, #tpu.memory_space<vmem>>, vector<1x32x128xbf16>
    %297 = vector.shape_cast %296 : vector<1x32x128xbf16> to vector<32x128xbf16>
    %cst_130 = arith.constant dense<0.000000e+00> : vector<8x128xf32>
    %298 = tpu.matmul %295, %297, %cst_130 {dimension_numbers = #tpu.dot_dimension_numbers<[1], [0], [0], [1], [0, 0, 1, 1], [], []>} : vector<8x32xbf16>, vector<32x128xbf16>, vector<8x128xf32> -> vector<8x128xf32>
    %c0_131 = arith.constant 0 : index
    %c0_132 = arith.constant 0 : index
    %299 = vector.load %arg12[%c0_131, %c0_132] : memref<2x128xf32, #tpu.memory_space<vmem>>, vector<1x128xf32>
    %300 = vector.broadcast %299 : vector<1x128xf32> to vector<8x128xf32>
    %301 = arith.addf %298, %300 : vector<8x128xf32>
    %cst_133 = arith.constant 5.000000e-01 : f32
    %302 = vector.broadcast %cst_133 : f32 to vector<8x128xf32>
    %303 = arith.mulf %302, %301 : vector<8x128xf32>
    %cst_134 = arith.constant 0.707106769 : f32
    %304 = vector.broadcast %cst_134 : f32 to vector<8x128xf32>
    %305 = arith.mulf %301, %304 : vector<8x128xf32>
    %306 = math.erf %305 : vector<8x128xf32>
    %cst_135 = arith.constant 1.000000e+00 : f32
    %307 = vector.broadcast %cst_135 : f32 to vector<8x128xf32>
    %308 = arith.addf %307, %306 : vector<8x128xf32>
    %309 = arith.mulf %303, %308 : vector<8x128xf32>
    %310 = arith.truncf %309 : vector<8x128xf32> to vector<8x128xbf16>
    %c0_136 = arith.constant 0 : index
    %c0_137 = arith.constant 0 : index
    %c0_138 = arith.constant 0 : index
    %311 = vector.load %arg13[%c0_136, %c0_137, %c0_138] : memref<2x128x32xbf16, #tpu.memory_space<vmem>>, vector<1x128x32xbf16>
    %312 = vector.shape_cast %311 : vector<1x128x32xbf16> to vector<128x32xbf16>
    %cst_139 = arith.constant dense<0.000000e+00> : vector<8x32xf32>
    %313 = tpu.matmul %310, %312, %cst_139 {dimension_numbers = #tpu.dot_dimension_numbers<[1], [0], [0], [1], [0, 0, 1, 1], [], []>} : vector<8x128xbf16>, vector<128x32xbf16>, vector<8x32xf32> -> vector<8x32xf32>
    %314 = arith.addf %270, %313 : vector<8x32xf32>
    %c0_140 = arith.constant 0 : index
    %c0_141 = arith.constant 0 : index
    %315 = vector.load %arg14[%c0_140, %c0_141] : memref<2x32xf32, #tpu.memory_space<vmem>>, vector<1x32xf32>
    %316 = vector.broadcast %315 : vector<1x32xf32> to vector<8x32xf32>
    %317 = arith.addf %314, %316 : vector<8x32xf32>
    %c1_142 = arith.constant 1 : index
    %c0_143 = arith.constant 0 : index
    %318 = vector.load %arg9[%c1_142, %c0_143] : memref<2x32xf32, #tpu.memory_space<vmem>>, vector<1x32xf32>
    %c1_144 = arith.constant 1 : index
    %c0_145 = arith.constant 0 : index
    %319 = vector.load %arg10[%c1_144, %c0_145] : memref<2x32xf32, #tpu.memory_space<vmem>>, vector<1x32xf32>
    %cst_146 = arith.constant dense<0.000000e+00> : vector<8xf32>
    %320 = vector.multi_reduction <add>, %269, %cst_146 [1] : vector<8x32xf32> to vector<8xf32>
    %321 = vector.shape_cast %320 : vector<8xf32> to vector<8x1xf32>
    %cst_147 = arith.constant 3.200000e+01 : f32
    %322 = vector.broadcast %cst_147 : f32 to vector<8x1xf32>
    %323 = arith.divf %321, %322 : vector<8x1xf32>
    %324 = vector.broadcast %323 : vector<8x1xf32> to vector<8x32xf32>
    %325 = arith.subf %269, %324 : vector<8x32xf32>
    %326 = arith.mulf %325, %325 : vector<8x32xf32>
    %cst_148 = arith.constant dense<0.000000e+00> : vector<8xf32>
    %327 = vector.multi_reduction <add>, %326, %cst_148 [1] : vector<8x32xf32> to vector<8xf32>
    %328 = vector.shape_cast %327 : vector<8xf32> to vector<8x1xf32>
    %cst_149 = arith.constant 3.200000e+01 : f32
    %329 = vector.broadcast %cst_149 : f32 to vector<8x1xf32>
    %330 = arith.divf %328, %329 : vector<8x1xf32>
    %331 = vector.broadcast %323 : vector<8x1xf32> to vector<8x32xf32>
    %332 = arith.subf %269, %331 : vector<8x32xf32>
    %cst_150 = arith.constant 9.99999974E-6 : f32
    %333 = vector.broadcast %cst_150 : f32 to vector<8x1xf32>
    %334 = arith.addf %330, %333 : vector<8x1xf32>
    %335 = math.rsqrt %334 : vector<8x1xf32>
    %336 = vector.broadcast %335 : vector<8x1xf32> to vector<8x32xf32>
    %337 = arith.mulf %332, %336 : vector<8x32xf32>
    %338 = vector.broadcast %318 : vector<1x32xf32> to vector<8x32xf32>
    %339 = arith.mulf %337, %338 : vector<8x32xf32>
    %340 = vector.broadcast %319 : vector<1x32xf32> to vector<8x32xf32>
    %341 = arith.addf %339, %340 : vector<8x32xf32>
    %342 = arith.truncf %341 : vector<8x32xf32> to vector<8x32xbf16>
    %c1_151 = arith.constant 1 : index
    %c0_152 = arith.constant 0 : index
    %c0_153 = arith.constant 0 : index
    %343 = vector.load %arg11[%c1_151, %c0_152, %c0_153] : memref<2x32x128xbf16, #tpu.memory_space<vmem>>, vector<1x32x128xbf16>
    %344 = vector.shape_cast %343 : vector<1x32x128xbf16> to vector<32x128xbf16>
    %cst_154 = arith.constant dense<0.000000e+00> : vector<8x128xf32>
    %345 = tpu.matmul %342, %344, %cst_154 {dimension_numbers = #tpu.dot_dimension_numbers<[1], [0], [0], [1], [0, 0, 1, 1], [], []>} : vector<8x32xbf16>, vector<32x128xbf16>, vector<8x128xf32> -> vector<8x128xf32>
    %c1_155 = arith.constant 1 : index
    %c0_156 = arith.constant 0 : index
    %346 = vector.load %arg12[%c1_155, %c0_156] : memref<2x128xf32, #tpu.memory_space<vmem>>, vector<1x128xf32>
    %347 = vector.broadcast %346 : vector<1x128xf32> to vector<8x128xf32>
    %348 = arith.addf %345, %347 : vector<8x128xf32>
    %cst_157 = arith.constant 5.000000e-01 : f32
    %349 = vector.broadcast %cst_157 : f32 to vector<8x128xf32>
    %350 = arith.mulf %349, %348 : vector<8x128xf32>
    %cst_158 = arith.constant 0.707106769 : f32
    %351 = vector.broadcast %cst_158 : f32 to vector<8x128xf32>
    %352 = arith.mulf %348, %351 : vector<8x128xf32>
    %353 = math.erf %352 : vector<8x128xf32>
    %cst_159 = arith.constant 1.000000e+00 : f32
    %354 = vector.broadcast %cst_159 : f32 to vector<8x128xf32>
    %355 = arith.addf %354, %353 : vector<8x128xf32>
    %356 = arith.mulf %350, %355 : vector<8x128xf32>
    %357 = arith.truncf %356 : vector<8x128xf32> to vector<8x128xbf16>
    %c1_160 = arith.constant 1 : index
    %c0_161 = arith.constant 0 : index
    %c0_162 = arith.constant 0 : index
    %358 = vector.load %arg13[%c1_160, %c0_161, %c0_162] : memref<2x128x32xbf16, #tpu.memory_space<vmem>>, vector<1x128x32xbf16>
    %359 = vector.shape_cast %358 : vector<1x128x32xbf16> to vector<128x32xbf16>
    %cst_163 = arith.constant dense<0.000000e+00> : vector<8x32xf32>
    %360 = tpu.matmul %357, %359, %cst_163 {dimension_numbers = #tpu.dot_dimension_numbers<[1], [0], [0], [1], [0, 0, 1, 1], [], []>} : vector<8x128xbf16>, vector<128x32xbf16>, vector<8x32xf32> -> vector<8x32xf32>
    %361 = arith.addf %317, %360 : vector<8x32xf32>
    %c1_164 = arith.constant 1 : index
    %c0_165 = arith.constant 0 : index
    %362 = vector.load %arg14[%c1_164, %c0_165] : memref<2x32xf32, #tpu.memory_space<vmem>>, vector<1x32xf32>
    %363 = vector.broadcast %362 : vector<1x32xf32> to vector<8x32xf32>
    %364 = arith.addf %361, %363 : vector<8x32xf32>
    %365 = arith.addf %269, %364 : vector<8x32xf32>
    %c0_166 = arith.constant 0 : index
    %c0_167 = arith.constant 0 : index
    %c0_168 = arith.constant 0 : index
    %366 = vector.load %arg15[%c0_166, %c0_167, %c0_168] : memref<1x8x32xf32, #tpu.memory_space<vmem>>, vector<1x8x32xf32>
    %367 = vector.shape_cast %366 : vector<1x8x32xf32> to vector<8x32xf32>
    %368 = vector.shape_cast %365 : vector<8x32xf32> to vector<1x8x32xf32>
    tpu.vector_store %arg15[%c0_166, %c0_167, %c0_168], %368 {strides = array<i32>} : memref<1x8x32xf32, #tpu.memory_space<vmem>>, vector<1x8x32xf32>,
    return
  }
  func.func @transform_0(%arg0: i32) -> (i32, i32, i32) {
    %c0_i32 = arith.constant 0 : i32
    %c0_i32_0 = arith.constant 0 : i32
    %c0_i32_1 = arith.constant 0 : i32
    return %arg0, %c0_i32, %c0_i32_0 : i32, i32, i32
  }
  func.func @transform_1(%arg0: i32) -> (i32, i32) {
    %c0_i32 = arith.constant 0 : i32
    %c0_i32_0 = arith.constant 0 : i32
    %c0_i32_1 = arith.constant 0 : i32
    return %c0_i32, %c0_i32_0 : i32, i32
  }
  func.func @transform_2(%arg0: i32) -> (i32, i32) {
    %c0_i32 = arith.constant 0 : i32
    %c0_i32_0 = arith.constant 0 : i32
    %c0_i32_1 = arith.constant 0 : i32
    return %c0_i32, %c0_i32_0 : i32, i32
  }
  func.func @transform_3(%arg0: i32) -> (i32, i32, i32) {
    %c0_i32 = arith.constant 0 : i32
    %c0_i32_0 = arith.constant 0 : i32
    %c0_i32_1 = arith.constant 0 : i32
    %c0_i32_2 = arith.constant 0 : i32
    return %c0_i32, %c0_i32_0, %c0_i32_1 : i32, i32, i32
  }
  func.func @transform_4(%arg0: i32) -> (i32, i32, i32) {
    %c0_i32 = arith.constant 0 : i32
    %c0_i32_0 = arith.constant 0 : i32
    %c0_i32_1 = arith.constant 0 : i32
    %c0_i32_2 = arith.constant 0 : i32
    return %c0_i32, %c0_i32_0, %c0_i32_1 : i32, i32, i32
  }
  func.func @transform_5(%arg0: i32) -> (i32, i32, i32) {
    %c0_i32 = arith.constant 0 : i32
    %c0_i32_0 = arith.constant 0 : i32
    %c0_i32_1 = arith.constant 0 : i32
    %c0_i32_2 = arith.constant 0 : i32
    return %c0_i32, %c0_i32_0, %c0_i32_1 : i32, i32, i32
  }
  func.func @transform_6(%arg0: i32) -> (i32, i32, i32, i32) {
    %c0_i32 = arith.constant 0 : i32
    %c0_i32_0 = arith.constant 0 : i32
    %c0_i32_1 = arith.constant 0 : i32
    %c0_i32_2 = arith.constant 0 : i32
    %c0_i32_3 = arith.constant 0 : i32
    return %c0_i32, %c0_i32_0, %c0_i32_1, %c0_i32_2 : i32, i32, i32, i32
  }
  func.func @transform_7(%arg0: i32) -> (i32, i32) {
    %c0_i32 = arith.constant 0 : i32
    %c0_i32_0 = arith.constant 0 : i32
    %c0_i32_1 = arith.constant 0 : i32
    return %c0_i32, %c0_i32_0 : i32, i32
  }
  func.func @transform_8(%arg0: i32) -> (i32, i32) {
    %c0_i32 = arith.constant 0 : i32
    %c0_i32_0 = arith.constant 0 : i32
    %c0_i32_1 = arith.constant 0 : i32
    return %c0_i32, %c0_i32_0 : i32, i32
  }
  func.func @transform_9(%arg0: i32) -> (i32, i32) {
    %c0_i32 = arith.constant 0 : i32
    %c0_i32_0 = arith.constant 0 : i32
    %c0_i32_1 = arith.constant 0 : i32
    return %c0_i32, %c0_i32_0 : i32, i32
  }
  func.func @transform_10(%arg0: i32) -> (i32, i32, i32) {
    %c0_i32 = arith.constant 0 : i32
    %c0_i32_0 = arith.constant 0 : i32
    %c0_i32_1 = arith.constant 0 : i32
    %c0_i32_2 = arith.constant 0 : i32
    return %c0_i32, %c0_i32_0, %c0_i32_1 : i32, i32, i32
  }
  func.func @transform_11(%arg0: i32) -> (i32, i32) {
    %c0_i32 = arith.constant 0 : i32
    %c0_i32_0 = arith.constant 0 : i32
    %c0_i32_1 = arith.constant 0 : i32
    return %c0_i32, %c0_i32_0 : i32, i32
  }
  func.func @transform_12(%arg0: i32) -> (i32, i32, i32) {
    %c0_i32 = arith.constant 0 : i32
    %c0_i32_0 = arith.constant 0 : i32
    %c0_i32_1 = arith.constant 0 : i32
    %c0_i32_2 = arith.constant 0 : i32
    return %c0_i32, %c0_i32_0, %c0_i32_1 : i32, i32, i32
  }
  func.func @transform_13(%arg0: i32) -> (i32, i32) {
    %c0_i32 = arith.constant 0 : i32
    %c0_i32_0 = arith.constant 0 : i32
    %c0_i32_1 = arith.constant 0 : i32
    return %c0_i32, %c0_i32_0 : i32, i32
  }
  func.func @transform_14(%arg0: i32) -> (i32, i32, i32) {
    %c0_i32 = arith.constant 0 : i32
    %c0_i32_0 = arith.constant 0 : i32
    %c0_i32_1 = arith.constant 0 : i32
    return %arg0, %c0_i32, %c0_i32_0 : i32, i32, i32
  }
}

</mosaic_0001>

<llo_original>
// kernel: tpu_custom_call.1
$region0: #{tpu_custom_call.1}
  #allocation0 [shape = 'u32[]', space=smem, size = 0x4, offset = 0x4, fixed_abs, tag = 'smem constant byte address 0x4 - core index']
  #allocation1 [shape = 'u32[72,128]{1,0:T(1,128)}', space=vmem, size = 0x9000, scoped, tag = 'internal scratch']
  %s0 = inlined_call_operand.hbm [shape: f32[2,8,32], index: 0, kind: input, shape index: {}]
  %s1 = inlined_call_operand.hbm [shape: f32[2,32], index: 1, kind: input, shape index: {}]
  %s2 = inlined_call_operand.hbm [shape: f32[2,32], index: 2, kind: input, shape index: {}]
  %s3 = inlined_call_operand.vmem [shape: bf16[2,32,32], index: 3, kind: input, shape index: {}]
  %s4 = inlined_call_operand.vmem [shape: bf16[2,32,32], index: 4, kind: input, shape index: {}]
  %s5 = inlined_call_operand.vmem [shape: bf16[2,32,32], index: 5, kind: input, shape index: {}]
  %s6 = inlined_call_operand.vmem [shape: bf16[2,4,8,32], index: 6, kind: input, shape index: {}]
  %s7 = inlined_call_operand.vmem [shape: f32[2,32], index: 7, kind: input, shape index: {}]
  %s8 = inlined_call_operand.vmem [shape: f32[2,32], index: 8, kind: input, shape index: {}]
  %s9 = inlined_call_operand.vmem [shape: f32[2,32], index: 9, kind: input, shape index: {}]
  %s10 = inlined_call_operand.vmem [shape: bf16[2,32,128], index: 10, kind: input, shape index: {}]
  %s11 = inlined_call_operand.vmem [shape: f32[2,128], index: 11, kind: input, shape index: {}]
  %s12 = inlined_call_operand.vmem [shape: bf16[2,128,32], index: 12, kind: input, shape index: {}]
  %s13 = inlined_call_operand.vmem [shape: f32[2,32], index: 13, kind: input, shape index: {}]
  %s14 = inlined_call_operand.hbm [shape: f32[2,8,32], index: 14, kind: output, shape index: {}]
  %s15 = sld [smem:[#allocation0]]
  $region101: #{tpu_custom_call.1} parent=0
    _
  %s17 = ssub.s32 1, %s15
  %s18 = scalar_select 0, %s17, %s15
  $region1: #{tpu_custom_call.1} parent=0
    #allocation2 [shape = 'u8[8192]{0}', space=vmem, size = 0x2000, scoped, tag = 'input window, operand 0']
    #allocation3 [shape = 's32[2]{0}', space=sflag, size = 0x8, scoped, tag = 'scoped memory for tpu_custom_call.1']
    #allocation4 [shape = 's32[2]{0}', space=sflag, size = 0x8, scoped, tag = 'scoped memory for tpu_custom_call.1']
    #allocation5 [shape = 'u8[1024]{0}', space=vmem, size = 0x400, scoped, tag = 'input window, operand 1, single buffered']
    #allocation6 [shape = 's32[1]{0}', space=sflag, size = 0x4, scoped, tag = 'scoped memory for tpu_custom_call.1']
    #allocation7 [shape = 'u8[1024]{0}', space=vmem, size = 0x400, scoped, tag = 'input window, operand 2, single buffered']
    #allocation8 [shape = 'u8[8192]{0}', space=vmem, size = 0x2000, scoped, tag = 'output window, operand 0']
    %19 = vsyncpa [#allocation3], 0
    %s20 = scalar_lea.sflag [#allocation3], 1
    %21 = vsyncpa %s20, 0
    %22 = vsyncpa [#allocation6], 0
    %23 = vsyncpa [#allocation4], 0
    %s24 = scalar_lea.sflag [#allocation4], 1
    %25 = vsyncpa %s24, 0
    loop: start=0, step=1, limit=4
    $region2: #{tpu_custom_call.1} parent=1 // loop_pre_header
      _
    $region3: #{tpu_custom_call.1} parent=1 // loop_header
      %s27 = sphi 0, %s31
      %p28 = scmp.ge.s32.totalorder %s27, 4
      %s37 = sphi 0, %s39
      %s40 = sphi 0, %s37
      %s41 = sphi 0, %s40
      %s57 = sphi 0, %s41
      %s61 = sphi 0, %s61
      %s63 = sphi 0, %s61
      %s64 = sphi 0, %s63
      %s78 = sphi 0, %s64
      %s82 = sphi 0, %s82
      %s84 = sphi 0, %s82
      %s85 = sphi 0, %s84
      %s99 = sphi 0, %s85
      %s103 = sphi 0, %s103
      %s105 = sphi 0, %s103
      %s106 = sphi 0, %s105
      %s120 = sphi 0, %s106
      %s124 = sphi 0, %s124
      %s126 = sphi 0, %s124
      %s127 = sphi 0, %s126
      %s141 = sphi 0, %s127
      %s145 = sphi 0, %s145
      %s147 = sphi 0, %s145
      %s148 = sphi 0, %s147
      %s162 = sphi 0, %s148
      %s166 = sphi 0, %s166
      %s168 = sphi 0, %s166
      %s169 = sphi 0, %s168
      %s183 = sphi 0, %s169
      %s187 = sphi 0, %s187
      %s189 = sphi 0, %s187
      %s190 = sphi 0, %s189
      %s204 = sphi 0, %s190
      %s208 = sphi 0, %s208
      %s210 = sphi 0, %s208
      %s211 = sphi 0, %s210
      %s225 = sphi 0, %s211
      %s229 = sphi 0, %s229
      %s231 = sphi 0, %s229
      %s232 = sphi 0, %s231
      %s246 = sphi 0, %s232
      %s250 = sphi 0, %s250
      %s252 = sphi 0, %s250
      %s253 = sphi 0, %s252
      %s267 = sphi 0, %s253
      %s271 = sphi 0, %s271
      %s273 = sphi 0, %s271
      %s274 = sphi 0, %s273
      %s288 = sphi 0, %s274
      %s292 = sphi 0, %s292
      %s294 = sphi 0, %s292
      %s295 = sphi 0, %s294
      %s309 = sphi 0, %s295
      %s313 = sphi 0, %s313
      %s315 = sphi 0, %s313
      %s316 = sphi 0, %s315
      %s330 = sphi 0, %s316
      %s336 = sphi 0, %s338
      %s339 = sphi 0, %s336
      %s340 = sphi 0, %s339
      %s356 = sphi 0, %s340
    $region4: #{tpu_custom_call.1} parent=1 // loop_header_branch
      %30 = sbr.rel (%p28) target = $region8
    $region5: #{tpu_custom_call.1} parent=1 // loop_body
      %s32 = ssub.s32 %s27, 1
      %s33 = ssub.s32 %s27, 2
      %s34 = sadd.s32 %s27, 1
      %s35 = ssub.s32 %s27, %s34
      %p36 = scmp.eq.s32.totalorder %s35, 0
      %s38 = sadd.s32 %s37, 1
      %s39 = scalar_select %p36, %s37, %s38
      %p42 = pneg %p36
      %p43 = scmp.eq.s32.totalorder %s27, 1
      %p44 = por %p42, %p43
      %p45 = scmp.ne.s32.totalorder %s37, %s40
      %p46 = scmp.eq.s32.totalorder %s27, 0
      %p47 = por %p45, %p46
      %p48 = scmp.ne.s32.totalorder %s37, %s40
      %p49 = scmp.eq.s32.totalorder %s32, 1
      %p50 = por %p48, %p49
      %p51 = scmp.ne.s32.totalorder %s40, %s41
      %p52 = scmp.eq.s32.totalorder %s32, 0
      %p53 = por %p51, %p52
      %p54 = scmp.ne.s32.totalorder %s40, %s41
      %p55 = scmp.eq.s32.totalorder %s33, 1
      %p56 = por %p54, %p55
      %p58 = scmp.ne.s32.totalorder %s41, %s57
      %p59 = scmp.eq.s32.totalorder %s33, 0
      %p60 = por %p58, %p59
      %s62 = sadd.s32 %s61, 1
      %p65 = scmp.eq.s32.totalorder %s27, 1
      %p66 = scmp.ne.s32.totalorder %s61, %s63
      %p67 = scmp.eq.s32.totalorder %s27, 0
      %p68 = por %p66, %p67
      %p69 = scmp.ne.s32.totalorder %s61, %s63
      %p70 = scmp.eq.s32.totalorder %s32, 1
      %p71 = por %p69, %p70
      %p72 = scmp.ne.s32.totalorder %s63, %s64
      %p73 = scmp.eq.s32.totalorder %s32, 0
      %p74 = por %p72, %p73
      %p75 = scmp.ne.s32.totalorder %s63, %s64
      %p76 = scmp.eq.s32.totalorder %s33, 1
      %p77 = por %p75, %p76
      %p79 = scmp.ne.s32.totalorder %s64, %s78
      %p80 = scmp.eq.s32.totalorder %s33, 0
      %p81 = por %p79, %p80
      %s83 = sadd.s32 %s82, 1
      %p86 = scmp.eq.s32.totalorder %s27, 1
      %p87 = scmp.ne.s32.totalorder %s82, %s84
      %p88 = scmp.eq.s32.totalorder %s27, 0
      %p89 = por %p87, %p88
      %p90 = scmp.ne.s32.totalorder %s82, %s84
      %p91 = scmp.eq.s32.totalorder %s32, 1
      %p92 = por %p90, %p91
      %p93 = scmp.ne.s32.totalorder %s84, %s85
      %p94 = scmp.eq.s32.totalorder %s32, 0
      %p95 = por %p93, %p94
      %p96 = scmp.ne.s32.totalorder %s84, %s85
      %p97 = scmp.eq.s32.totalorder %s33, 1
      %p98 = por %p96, %p97
      %p100 = scmp.ne.s32.totalorder %s85, %s99
      %p101 = scmp.eq.s32.totalorder %s33, 0
      %p102 = por %p100, %p101
      %s104 = sadd.s32 %s103, 1
      %p107 = scmp.eq.s32.totalorder %s27, 1
      %p108 = scmp.ne.s32.totalorder %s103, %s105
      %p109 = scmp.eq.s32.totalorder %s27, 0
      %p110 = por %p108, %p109
      %p111 = scmp.ne.s32.totalorder %s103, %s105
      %p112 = scmp.eq.s32.totalorder %s32, 1
      %p113 = por %p111, %p112
      %p114 = scmp.ne.s32.totalorder %s105, %s106
      %p115 = scmp.eq.s32.totalorder %s32, 0
      %p116 = por %p114, %p115
      %p117 = scmp.ne.s32.totalorder %s105, %s106
      %p118 = scmp.eq.s32.totalorder %s33, 1
      %p119 = por %p117, %p118
      %p121 = scmp.ne.s32.totalorder %s106, %s120
      %p122 = scmp.eq.s32.totalorder %s33, 0
      %p123 = por %p121, %p122
      %s125 = sadd.s32 %s124, 1
      %p128 = scmp.eq.s32.totalorder %s27, 1
      %p129 = scmp.ne.s32.totalorder %s124, %s126
      %p130 = scmp.eq.s32.totalorder %s27, 0
      %p131 = por %p129, %p130
      %p132 = scmp.ne.s32.totalorder %s124, %s126
      %p133 = scmp.eq.s32.totalorder %s32, 1
      %p134 = por %p132, %p133
      %p135 = scmp.ne.s32.totalorder %s126, %s127
      %p136 = scmp.eq.s32.totalorder %s32, 0
      %p137 = por %p135, %p136
      %p138 = scmp.ne.s32.totalorder %s126, %s127
      %p139 = scmp.eq.s32.totalorder %s33, 1
      %p140 = por %p138, %p139
      %p142 = scmp.ne.s32.totalorder %s127, %s141
      %p143 = scmp.eq.s32.totalorder %s33, 0
      %p144 = por %p142, %p143
      %s146 = sadd.s32 %s145, 1
      %p149 = scmp.eq.s32.totalorder %s27, 1
      %p150 = scmp.ne.s32.totalorder %s145, %s147
      %p151 = scmp.eq.s32.totalorder %s27, 0
      %p152 = por %p150, %p151
      %p153 = scmp.ne.s32.totalorder %s145, %s147
      %p154 = scmp.eq.s32.totalorder %s32, 1
      %p155 = por %p153, %p154
      %p156 = scmp.ne.s32.totalorder %s147, %s148
      %p157 = scmp.eq.s32.totalorder %s32, 0
      %p158 = por %p156, %p157
      %p159 = scmp.ne.s32.totalorder %s147, %s148
      %p160 = scmp.eq.s32.totalorder %s33, 1
      %p161 = por %p159, %p160
      %p163 = scmp.ne.s32.totalorder %s148, %s162
      %p164 = scmp.eq.s32.totalorder %s33, 0
      %p165 = por %p163, %p164
      %s167 = sadd.s32 %s166, 1
      %p170 = scmp.eq.s32.totalorder %s27, 1
      %p171 = scmp.ne.s32.totalorder %s166, %s168
      %p172 = scmp.eq.s32.totalorder %s27, 0
      %p173 = por %p171, %p172
      %p174 = scmp.ne.s32.totalorder %s166, %s168
      %p175 = scmp.eq.s32.totalorder %s32, 1
      %p176 = por %p174, %p175
      %p177 = scmp.ne.s32.totalorder %s168, %s169
      %p178 = scmp.eq.s32.totalorder %s32, 0
      %p179 = por %p177, %p178
      %p180 = scmp.ne.s32.totalorder %s168, %s169
      %p181 = scmp.eq.s32.totalorder %s33, 1
      %p182 = por %p180, %p181
      %p184 = scmp.ne.s32.totalorder %s169, %s183
      %p185 = scmp.eq.s32.totalorder %s33, 0
      %p186 = por %p184, %p185
      %s188 = sadd.s32 %s187, 1
      %p191 = scmp.eq.s32.totalorder %s27, 1
      %p192 = scmp.ne.s32.totalorder %s187, %s189
      %p193 = scmp.eq.s32.totalorder %s27, 0
      %p194 = por %p192, %p193
      %p195 = scmp.ne.s32.totalorder %s187, %s189
      %p196 = scmp.eq.s32.totalorder %s32, 1
      %p197 = por %p195, %p196
      %p198 = scmp.ne.s32.totalorder %s189, %s190
      %p199 = scmp.eq.s32.totalorder %s32, 0
      %p200 = por %p198, %p199
      %p201 = scmp.ne.s32.totalorder %s189, %s190
      %p202 = scmp.eq.s32.totalorder %s33, 1
      %p203 = por %p201, %p202
      %p205 = scmp.ne.s32.totalorder %s190, %s204
      %p206 = scmp.eq.s32.totalorder %s33, 0
      %p207 = por %p205, %p206
      %s209 = sadd.s32 %s208, 1
      %p212 = scmp.eq.s32.totalorder %s27, 1
      %p213 = scmp.ne.s32.totalorder %s208, %s210
      %p214 = scmp.eq.s32.totalorder %s27, 0
      %p215 = por %p213, %p214
      %p216 = scmp.ne.s32.totalorder %s208, %s210
      %p217 = scmp.eq.s32.totalorder %s32, 1
      %p218 = por %p216, %p217
      %p219 = scmp.ne.s32.totalorder %s210, %s211
      %p220 = scmp.eq.s32.totalorder %s32, 0
      %p221 = por %p219, %p220
      %p222 = scmp.ne.s32.totalorder %s210, %s211
      %p223 = scmp.eq.s32.totalorder %s33, 1
      %p224 = por %p222, %p223
      %p226 = scmp.ne.s32.totalorder %s211, %s225
      %p227 = scmp.eq.s32.totalorder %s33, 0
      %p228 = por %p226, %p227
      %s230 = sadd.s32 %s229, 1
      %p233 = scmp.eq.s32.totalorder %s27, 1
      %p234 = scmp.ne.s32.totalorder %s229, %s231
      %p235 = scmp.eq.s32.totalorder %s27, 0
      %p236 = por %p234, %p235
      %p237 = scmp.ne.s32.totalorder %s229, %s231
      %p238 = scmp.eq.s32.totalorder %s32, 1
      %p239 = por %p237, %p238
      %p240 = scmp.ne.s32.totalorder %s231, %s232
      %p241 = scmp.eq.s32.totalorder %s32, 0
      %p242 = por %p240, %p241
      %p243 = scmp.ne.s32.totalorder %s231, %s232
      %p244 = scmp.eq.s32.totalorder %s33, 1
      %p245 = por %p243, %p244
      %p247 = scmp.ne.s32.totalorder %s232, %s246
      %p248 = scmp.eq.s32.totalorder %s33, 0
      %p249 = por %p247, %p248
      %s251 = sadd.s32 %s250, 1
      %p254 = scmp.eq.s32.totalorder %s27, 1
      %p255 = scmp.ne.s32.totalorder %s250, %s252
      %p256 = scmp.eq.s32.totalorder %s27, 0
      %p257 = por %p255, %p256
      %p258 = scmp.ne.s32.totalorder %s250, %s252
      %p259 = scmp.eq.s32.totalorder %s32, 1
      %p260 = por %p258, %p259
      %p261 = scmp.ne.s32.totalorder %s252, %s253
      %p262 = scmp.eq.s32.totalorder %s32, 0
      %p263 = por %p261, %p262
      %p264 = scmp.ne.s32.totalorder %s252, %s253
      %p265 = scmp.eq.s32.totalorder %s33, 1
      %p266 = por %p264, %p265
      %p268 = scmp.ne.s32.totalorder %s253, %s267
      %p269 = scmp.eq.s32.totalorder %s33, 0
      %p270 = por %p268, %p269
      %s272 = sadd.s32 %s271, 1
      %p275 = scmp.eq.s32.totalorder %s27, 1
      %p276 = scmp.ne.s32.totalorder %s271, %s273
      %p277 = scmp.eq.s32.totalorder %s27, 0
      %p278 = por %p276, %p277
      %p279 = scmp.ne.s32.totalorder %s271, %s273
      %p280 = scmp.eq.s32.totalorder %s32, 1
      %p281 = por %p279, %p280
      %p282 = scmp.ne.s32.totalorder %s273, %s274
      %p283 = scmp.eq.s32.totalorder %s32, 0
      %p284 = por %p282, %p283
      %p285 = scmp.ne.s32.totalorder %s273, %s274
      %p286 = scmp.eq.s32.totalorder %s33, 1
      %p287 = por %p285, %p286
      %p289 = scmp.ne.s32.totalorder %s274, %s288
      %p290 = scmp.eq.s32.totalorder %s33, 0
      %p291 = por %p289, %p290
      %s293 = sadd.s32 %s292, 1
      %p296 = scmp.eq.s32.totalorder %s27, 1
      %p297 = scmp.ne.s32.totalorder %s292, %s294
      %p298 = scmp.eq.s32.totalorder %s27, 0
      %p299 = por %p297, %p298
      %p300 = scmp.ne.s32.totalorder %s292, %s294
      %p301 = scmp.eq.s32.totalorder %s32, 1
      %p302 = por %p300, %p301
      %p303 = scmp.ne.s32.totalorder %s294, %s295
      %p304 = scmp.eq.s32.totalorder %s32, 0
      %p305 = por %p303, %p304
      %p306 = scmp.ne.s32.totalorder %s294, %s295
      %p307 = scmp.eq.s32.totalorder %s33, 1
      %p308 = por %p306, %p307
      %p310 = scmp.ne.s32.totalorder %s295, %s309
      %p311 = scmp.eq.s32.totalorder %s33, 0
      %p312 = por %p310, %p311
      %s314 = sadd.s32 %s313, 1
      %p317 = scmp.eq.s32.totalorder %s27, 1
      %p318 = scmp.ne.s32.totalorder %s313, %s315
      %p319 = scmp.eq.s32.totalorder %s27, 0
      %p320 = por %p318, %p319
      %p321 = scmp.ne.s32.totalorder %s313, %s315
      %p322 = scmp.eq.s32.totalorder %s32, 1
      %p323 = por %p321, %p322
      %p324 = scmp.ne.s32.totalorder %s315, %s316
      %p325 = scmp.eq.s32.totalorder %s32, 0
      %p326 = por %p324, %p325
      %p327 = scmp.ne.s32.totalorder %s315, %s316
      %p328 = scmp.eq.s32.totalorder %s33, 1
      %p329 = por %p327, %p328
      %p331 = scmp.ne.s32.totalorder %s316, %s330
      %p332 = scmp.eq.s32.totalorder %s33, 0
      %p333 = por %p331, %p332
      %s334 = ssub.s32 %s27, %s34
      %p335 = scmp.eq.s32.totalorder %s334, 0
      %s337 = sadd.s32 %s336, 1
      %s338 = scalar_select %p335, %s336, %s337
      %p341 = pneg %p335
      %p342 = scmp.eq.s32.totalorder %s27, 1
      %p343 = por %p341, %p342
      %p344 = scmp.ne.s32.totalorder %s336, %s339
      %p345 = scmp.eq.s32.totalorder %s27, 0
      %p346 = por %p344, %p345
      %p347 = scmp.ne.s32.totalorder %s336, %s339
      %p348 = scmp.eq.s32.totalorder %s32, 1
      %p349 = por %p347, %p348
      %p350 = scmp.ne.s32.totalorder %s339, %s340
      %p351 = scmp.eq.s32.totalorder %s32, 0
      %p352 = por %p350, %p351
      %p353 = scmp.ne.s32.totalorder %s339, %s340
      %p354 = scmp.eq.s32.totalorder %s33, 1
      %p355 = por %p353, %p354
      %p357 = scmp.ne.s32.totalorder %s340, %s356
      %p358 = scmp.eq.s32.totalorder %s33, 0
      %p359 = por %p357, %p358
      %p360 = scmp.le.s32.totalorder 1, %s27
      %p361 = scmp.lt.s32.totalorder %s27, 3
      %p362 = pnand %p360, %p361
      %p363 = pneg %p362
      // Predicated region
      $region9: #{tpu_custom_call.1} parent=5 // pred_check
        _
      $region10: #{tpu_custom_call.1} parent=5 // pred_check_branch
        %365 = sbr.rel (%p362) target = $region12
      $region11: #{tpu_custom_call.1} parent=5 // pred_region
        %s366 = ssub.s32 %s27, 1
        // Predicated region
        $region13: #{tpu_custom_call.1} parent=11 // pred_check
          %p367 = pneg %p74
        $region14: #{tpu_custom_call.1} parent=11 // pred_check_branch
          %369 = sbr.rel (%p367) target = $region16
        $region15: #{tpu_custom_call.1} parent=11 // pred_region
          %371 = vsyncadd [#allocation6], 0
          %s373 = sshll.u32 %s1, 4
          %s374 = int_to_ptr.hbm [resolvable:$true] %s373
          %s375 = sshll.u32 [#allocation5], 4
          %s376 = int_to_ptr.vmem [resolvable:$true] %s375
          %378 = dma.hbm_to_vmem [thread:$0]  %s374, 32, %s376, [#allocation6]
        $region16: #{tpu_custom_call.1} parent=11 // pred_fallthru
          _
        // Predicated region
        $region17: #{tpu_custom_call.1} parent=11 // pred_check
          %p379 = pneg %p95
        $region18: #{tpu_custom_call.1} parent=11 // pred_check_branch
          %381 = sbr.rel (%p379) target = $region20
        $region19: #{tpu_custom_call.1} parent=11 // pred_region
          %383 = vsyncadd [#allocation6], 0
          %s385 = sshll.u32 %s2, 4
          %s386 = int_to_ptr.hbm [resolvable:$true] %s385
          %s387 = sshll.u32 [#allocation7], 4
          %s388 = int_to_ptr.vmem [resolvable:$true] %s387
          %390 = dma.hbm_to_vmem [thread:$0]  %s386, 32, %s388, [#allocation6]
        $region20: #{tpu_custom_call.1} parent=11 // pred_fallthru
          _
        // Predicated region
        $region21: #{tpu_custom_call.1} parent=11 // pred_check
          %p391 = pneg %p116
        $region22: #{tpu_custom_call.1} parent=11 // pred_check_branch
          %393 = sbr.rel (%p391) target = $region24
        $region23: #{tpu_custom_call.1} parent=11 // pred_region
          _
        $region24: #{tpu_custom_call.1} parent=11 // pred_fallthru
          _
        // Predicated region
        $region25: #{tpu_custom_call.1} parent=11 // pred_check
          %p394 = pneg %p137
        $region26: #{tpu_custom_call.1} parent=11 // pred_check_branch
          %396 = sbr.rel (%p394) target = $region28
        $region27: #{tpu_custom_call.1} parent=11 // pred_region
          _
        $region28: #{tpu_custom_call.1} parent=11 // pred_fallthru
          _
        // Predicated region
        $region29: #{tpu_custom_call.1} parent=11 // pred_check
          %p397 = pneg %p158
        $region30: #{tpu_custom_call.1} parent=11 // pred_check_branch
          %399 = sbr.rel (%p397) target = $region32
        $region31: #{tpu_custom_call.1} parent=11 // pred_region
          _
        $region32: #{tpu_custom_call.1} parent=11 // pred_fallthru
          _
        // Predicated region
        $region33: #{tpu_custom_call.1} parent=11 // pred_check
          %p400 = pneg %p179
        $region34: #{tpu_custom_call.1} parent=11 // pred_check_branch
          %402 = sbr.rel (%p400) target = $region36
        $region35: #{tpu_custom_call.1} parent=11 // pred_region
          _
        $region36: #{tpu_custom_call.1} parent=11 // pred_fallthru
          _
        // Predicated region
        $region37: #{tpu_custom_call.1} parent=11 // pred_check
          %p403 = pneg %p200
        $region38: #{tpu_custom_call.1} parent=11 // pred_check_branch
          %405 = sbr.rel (%p403) target = $region40
        $region39: #{tpu_custom_call.1} parent=11 // pred_region
          _
        $region40: #{tpu_custom_call.1} parent=11 // pred_fallthru
          _
        // Predicated region
        $region41: #{tpu_custom_call.1} parent=11 // pred_check
          %p406 = pneg %p221
        $region42: #{tpu_custom_call.1} parent=11 // pred_check_branch
          %408 = sbr.rel (%p406) target = $region44
        $region43: #{tpu_custom_call.1} parent=11 // pred_region
          _
        $region44: #{tpu_custom_call.1} parent=11 // pred_fallthru
          _
        // Predicated region
        $region45: #{tpu_custom_call.1} parent=11 // pred_check
          %p409 = pneg %p242
        $region46: #{tpu_custom_call.1} parent=11 // pred_check_branch
          %411 = sbr.rel (%p409) target = $region48
        $region47: #{tpu_custom_call.1} parent=11 // pred_region
          _
        $region48: #{tpu_custom_call.1} parent=11 // pred_fallthru
          _
        // Predicated region
        $region49: #{tpu_custom_call.1} parent=11 // pred_check
          %p412 = pneg %p263
        $region50: #{tpu_custom_call.1} parent=11 // pred_check_branch
          %414 = sbr.rel (%p412) target = $region52
        $region51: #{tpu_custom_call.1} parent=11 // pred_region
          _
        $region52: #{tpu_custom_call.1} parent=11 // pred_fallthru
          _
        // Predicated region
        $region53: #{tpu_custom_call.1} parent=11 // pred_check
          %p415 = pneg %p284
        $region54: #{tpu_custom_call.1} parent=11 // pred_check_branch
          %417 = sbr.rel (%p415) target = $region56
        $region55: #{tpu_custom_call.1} parent=11 // pred_region
          _
        $region56: #{tpu_custom_call.1} parent=11 // pred_fallthru
          _
        // Predicated region
        $region57: #{tpu_custom_call.1} parent=11 // pred_check
          %p418 = pneg %p305
        $region58: #{tpu_custom_call.1} parent=11 // pred_check_branch
          %420 = sbr.rel (%p418) target = $region60
        $region59: #{tpu_custom_call.1} parent=11 // pred_region
          _
        $region60: #{tpu_custom_call.1} parent=11 // pred_fallthru
          _
        // Predicated region
        $region61: #{tpu_custom_call.1} parent=11 // pred_check
          %p421 = pneg %p326
        $region62: #{tpu_custom_call.1} parent=11 // pred_check_branch
          %423 = sbr.rel (%p421) target = $region64
        $region63: #{tpu_custom_call.1} parent=11 // pred_region
          _
        $region64: #{tpu_custom_call.1} parent=11 // pred_fallthru
          _
      $region12: #{tpu_custom_call.1} parent=5 // pred_fallthru
        _
      %p424 = scmp.lt.s32.totalorder %s27, 2
      // Predicated region
      $region65: #{tpu_custom_call.1} parent=5 // pred_check
        %p425 = pneg %p424
      $region66: #{tpu_custom_call.1} parent=5 // pred_check_branch
        %427 = sbr.rel (%p425) target = $region68
      $region67: #{tpu_custom_call.1} parent=5 // pred_region
        // Predicated region
        $region69: #{tpu_custom_call.1} parent=67 // pred_check
          %p428 = pneg %p47
        $region70: #{tpu_custom_call.1} parent=67 // pred_check_branch
          %430 = sbr.rel (%p428) target = $region72
        $region71: #{tpu_custom_call.1} parent=67 // pred_region
          %s431 = sand.u32 %s37, 1
          %s432 = scalar_lea.sflag [#allocation3], %s431
          %s433 = sand.u32 %s37, 1
          %s434 = smul.addr %s433, 8
          %s435 = scalar_lea.vmem [#allocation2], %s434
          %437 = vsyncadd %s432, 0
          %s438 = smul.addr %s27, 8
          %s439 = scalar_lea.hbm %s0, %s438
          %s441 = sshll.u32 %s439, 4
          %s442 = int_to_ptr.hbm [resolvable:$true] %s441
          %s443 = sshll.u32 %s435, 4
          %s444 = int_to_ptr.vmem [resolvable:$true] %s443
          %446 = dma.hbm_to_vmem [thread:$0]  %s442, 128, %s444, %s432
        $region72: #{tpu_custom_call.1} parent=67 // pred_fallthru
          _
      $region68: #{tpu_custom_call.1} parent=5 // pred_fallthru
        _
      %p447 = scmp.le.s32.totalorder 1, %s27
      %p448 = scmp.lt.s32.totalorder %s27, 3
      %p449 = pnand %p447, %p448
      %p450 = pneg %p449
      // Predicated region
      $region73: #{tpu_custom_call.1} parent=5 // pred_check
        _
      $region74: #{tpu_custom_call.1} parent=5 // pred_check_branch
        %452 = sbr.rel (%p449) target = $region76
      $region75: #{tpu_custom_call.1} parent=5 // pred_region
        %s453 = ssub.s32 %s27, 1
        %s454 = sand.u32 %s40, 1
        %s455 = scalar_lea.sflag [#allocation3], %s454
        %s456 = sand.u32 %s40, 1
        %s457 = smul.addr %s456, 8
        %s458 = scalar_lea.vmem [#allocation2], %s457
        // Predicated region
        $region77: #{tpu_custom_call.1} parent=75 // pred_check
          %p459 = pneg %p53
        $region78: #{tpu_custom_call.1} parent=75 // pred_check_branch
          %461 = sbr.rel (%p459) target = $region80
        $region79: #{tpu_custom_call.1} parent=75 // pred_region
          %463 = dma.done %s455, 128
        $region80: #{tpu_custom_call.1} parent=75 // pred_fallthru
          _
        // Predicated region
        $region81: #{tpu_custom_call.1} parent=75 // pred_check
          %p464 = pneg %p74
        $region82: #{tpu_custom_call.1} parent=75 // pred_check_branch
          %466 = sbr.rel (%p464) target = $region84
        $region83: #{tpu_custom_call.1} parent=75 // pred_region
          %468 = dma.done [#allocation6], 32
        $region84: #{tpu_custom_call.1} parent=75 // pred_fallthru
          _
        // Predicated region
        $region85: #{tpu_custom_call.1} parent=75 // pred_check
          %p469 = pneg %p95
        $region86: #{tpu_custom_call.1} parent=75 // pred_check_branch
          %471 = sbr.rel (%p469) target = $region88
        $region87: #{tpu_custom_call.1} parent=75 // pred_region
          %473 = dma.done [#allocation6], 32
        $region88: #{tpu_custom_call.1} parent=75 // pred_fallthru
          _
        %s474 = sand.u32 %s40, 1
        %s475 = scalar_lea.sflag [#allocation3], %s474
        %s476 = sand.u32 %s40, 1
        %s477 = smul.addr %s476, 8
        %s478 = scalar_lea.vmem [#allocation2], %s477
        %p479 = pneg %p53
        %p480 = pneg %p50
        %p481 = pneg %p74
        %p482 = pneg %p71
        %p483 = pneg %p95
        %p484 = pneg %p92
        %p485 = pneg %p116
        %p486 = pneg %p113
        %p487 = pneg %p137
        %p488 = pneg %p134
        %p489 = pneg %p158
        %p490 = pneg %p155
        %p491 = pneg %p179
        %p492 = pneg %p176
        %p493 = pneg %p200
        %p494 = pneg %p197
        %p495 = pneg %p221
        %p496 = pneg %p218
        %p497 = pneg %p242
        %p498 = pneg %p239
        %p499 = pneg %p263
        %p500 = pneg %p260
        %p501 = pneg %p284
        %p502 = pneg %p281
        %p503 = pneg %p305
        %p504 = pneg %p302
        %p505 = pneg %p326
        %p506 = pneg %p323
        %p507 = pneg %p352
        %p508 = pneg %p349
        %s509 = sand.u32 %s339, 1
        %s510 = scalar_lea.sflag [#allocation4], %s509
        %s511 = sand.u32 %s339, 1
        %s512 = smul.addr %s511, 8
        %s513 = scalar_lea.vmem [#allocation8], %s512
        %v515 = vld [vmem:[%s458] sm:$0xff]
        %v516 = vld [vmem:[#allocation5] sm:$0x1]
        %v517 = vld [vmem:[#allocation7] sm:$0x1]
        %vm518 = vcmask 261120
        %v519 = vsel %vm518, %v515, 0.0
        %520 = vadd.xlane.f32.xlu0 %v519
        %v521 = vpop.xlane.xlu0 %520
        %v522 = vrcp.pop 32.0
        %v523 = vmul.f32 32.0, %v522
        %v524 = vsub.f32 1.0, %v523
        %v525 = vmul.f32 %v522, %v524
        %v526 = vadd.f32 %v522, %v525
        %vm527 = vweird.f32 %v522
        %v528 = vsel %vm527, %v522, %v526
        %v529 = vmul.f32 %v521, %v528
        %v530 = vsub.f32 %v515, %v529
        %v531 = vmul.f32 %v530, %v530
        %v532 = vsel %vm518, %v531, 0.0
        %533 = vadd.xlane.f32.xlu0 %v532
        %v534 = vpop.xlane.xlu0 %533
        %v535 = vmul.f32 %v534, %v528
        %v536 = vadd.f32 %v535, 1e-05
        %v537 = vrsqrt.pop %v536
        %v538 = vmul.f32 %v537, %v536
        %v539 = vmul.f32 %v538, %v537
        %v540 = vmul.f32 0.5, %v539
        %v541 = vsub.f32 1.5, %v540
        %v542 = vmul.f32 %v537, %v541
        %vm543 = vweird.f32 %v536
        %vm544 = vweird.f32 %v537
        %vm545 = vmor %vm543, %vm544
        %v546 = vsel %vm545, %v537, %v542
        %v547 = vmul.f32 %v530, %v546
        %v548 = vperm.slane %v516, 0
        %v549 = vmul.f32 %v547, %v548
        %v550 = vperm.slane %v517, 0
        %v551 = vadd.f32 %v549, %v550
        %v552 = vpack.c.bf16 %v551, %v551
        %v553 = vld [vmem:[%s3] sm:$0xf]
        %v554 = vld [vmem:[%s3 + $0x4] sm:$0xf]
        %v555 = vld [vmem:[%s3 + $0x8] sm:$0xf]
        %v556 = vld [vmem:[%s3 + $0xc] sm:$0xf]
        %v561 = vunpack.c.l.b16 %v553
        %v562 = vunpack.c.l.b16 %v554
        %v563 = vunpack.c.l.b16 %v555
        %v564 = vunpack.c.l.b16 %v556
        %v565 = vpack.c.b16 %v562, %v561
        %v566 = vpack.c.b16 %v564, %v563
        %v570 = vsel %vm518, %v552, 0
        %572 = vmatpush.bf16.msra.mxu0 0
        %573 = vmatpush.bf16.msra.mxu0 0
        %574 = vmatpush.bf16.msra.mxu0 0
        %575 = vmatpush.bf16.msra.mxu0 0
        %576 = vmatpush.bf16.msra.mxu0 0
        %577 = vmatpush.bf16.msra.mxu0 0
        %578 = vmatpush.bf16.msra.mxu0 %v566
        %579 = vmatpush.bf16.msra.mxu0 %v565
        %580 = vmatmul.bf16.gmra.mxu0 %v570
        %v581 = vpop.f32.mrf.mxu0
        %v582 = vadd.f32 0.0, %v581
        %v583 = vpop.f32.mrf.mxu0
        %584 = vdwg.mxu0
        %v585 = vld [vmem:[%s4] sm:$0xf]
        %v586 = vld [vmem:[%s4 + $0x4] sm:$0xf]
        %v587 = vld [vmem:[%s4 + $0x8] sm:$0xf]
        %v588 = vld [vmem:[%s4 + $0xc] sm:$0xf]
        %v593 = vunpack.c.l.b16 %v585
        %v594 = vunpack.c.l.b16 %v586
        %v595 = vunpack.c.l.b16 %v587
        %v596 = vunpack.c.l.b16 %v588
        %v597 = vpack.c.b16 %v594, %v593
        %v598 = vpack.c.b16 %v596, %v595
        %601 = vmatpush.bf16.msra.mxu0 0
        %602 = vmatpush.bf16.msra.mxu0 0
        %603 = vmatpush.bf16.msra.mxu0 0
        %604 = vmatpush.bf16.msra.mxu0 0
        %605 = vmatpush.bf16.msra.mxu0 0
        %606 = vmatpush.bf16.msra.mxu0 0
        %607 = vmatpush.bf16.msra.mxu0 %v598
        %608 = vmatpush.bf16.msra.mxu0 %v597
        %609 = vmatmul.bf16.gmra.mxu0 %v570
        %v610 = vpop.f32.mrf.mxu0
        %v611 = vadd.f32 0.0, %v610
        %v612 = vpop.f32.mrf.mxu0
        %613 = vdwg.mxu0
        %v614 = vld [vmem:[%s5] sm:$0xf]
        %v615 = vld [vmem:[%s5 + $0x4] sm:$0xf]
        %v616 = vld [vmem:[%s5 + $0x8] sm:$0xf]
        %v617 = vld [vmem:[%s5 + $0xc] sm:$0xf]
        %v622 = vunpack.c.l.b16 %v614
        %v623 = vunpack.c.l.b16 %v615
        %v624 = vunpack.c.l.b16 %v616
        %v625 = vunpack.c.l.b16 %v617
        %v626 = vpack.c.b16 %v623, %v622
        %v627 = vpack.c.b16 %v625, %v624
        %630 = vmatpush.bf16.msra.mxu0 0
        %631 = vmatpush.bf16.msra.mxu0 0
        %632 = vmatpush.bf16.msra.mxu0 0
        %633 = vmatpush.bf16.msra.mxu0 0
        %634 = vmatpush.bf16.msra.mxu0 0
        %635 = vmatpush.bf16.msra.mxu0 0
        %636 = vmatpush.bf16.msra.mxu0 %v627
        %637 = vmatpush.bf16.msra.mxu0 %v626
        %638 = vmatmul.bf16.gmra.mxu0 %v570
        %v639 = vpop.f32.mrf.mxu0
        %v640 = vadd.f32 0.0, %v639
        %v641 = vpop.f32.mrf.mxu0
        %642 = vdwg.mxu0
        %v643 = vpack.c.bf16 %v582, %v582
        %v644 = vpack.c.bf16 %v611, %v611
        %v645 = vpack.c.bf16 %v640, %v640
        %vm646 = vcmask 64512
        %v648 = vsel %vm646, %v643, 0
        %v651 = vsel %vm646, %v644, 0
        %653 = vmatpush.bf16.xpose.msra.mxu0 0
        %654 = vmatpush.bf16.xpose.msra.mxu0 0
        %655 = vmatpush.bf16.xpose.msra.mxu0 0
        %656 = vmatpush.bf16.xpose.msra.mxu0 0
        %657 = vmatpush.bf16.xpose.msra.mxu0 0
        %658 = vmatpush.bf16.xpose.msra.mxu0 0
        %659 = vmatpush.bf16.xpose.msra.mxu0 0
        %660 = vmatpush.bf16.xpose.msra.mxu0 %v651
        %661 = vmatmul.bf16.gmra.mxu0 %v648
        %v662 = vpop.f32.mrf.mxu0
        %v663 = vadd.f32 0.0, %v662
        %v664 = vpop.f32.mrf.mxu0
        %665 = vdwg.mxu0
        %v666 = vsel %vm646, %v663, -inf
        %667 = vmax.xlane.f32.xlu0 %v666
        %v668 = vpop.xlane.xlu0 %667
        %v669 = vsub.f32 %v663, %v668
        %v670 = vmul.f32 %v669, 1.442695
        %v671 = vpow.pop %v670
        %v672 = vsel %vm646, %v671, 0.0
        %673 = vadd.xlane.f32.xlu0 %v672
        %v674 = vpop.xlane.xlu0 %673
        %v675 = vrcp.pop %v674
        %v676 = vmul.f32 %v671, %v675
        %v677 = vpack.c.bf16 %v676, %v676
        %v679 = vsel %vm646, %v677, 0
        %vm681 = vcmask 1043456
        %v683 = vsel %vm681, %v645, 0
        %685 = vmatpush.bf16.msra.mxu0 0
        %686 = vmatpush.bf16.msra.mxu0 0
        %687 = vmatpush.bf16.msra.mxu0 0
        %688 = vmatpush.bf16.msra.mxu0 0
        %689 = vmatpush.bf16.msra.mxu0 0
        %690 = vmatpush.bf16.msra.mxu0 0
        %691 = vmatpush.bf16.msra.mxu0 0
        %692 = vmatpush.bf16.msra.mxu0 %v683
        %693 = vmatmul.bf16.gmra.mxu0 %v679
        %v694 = vpop.f32.mrf.mxu0
        %v695 = vadd.f32 0.0, %v694
        %v696 = vpop.f32.mrf.mxu0
        %697 = vdwg.mxu0
        %v698 = vpack.c.bf16 %v695, %v695
        %v699 = vld [vmem:[%s6] sm:$0xf]
        %701 = vrot.lane.b32.xlu0 %v643, 120
        %v702 = vpop.permute.xlu0 %701
        %704 = vrot.lane.b32.xlu0 %v644, 120
        %v705 = vpop.permute.xlu0 %704
        %v707 = vsel %vm646, %v702, 0
        %v710 = vsel %vm646, %v705, 0
        %712 = vmatpush.bf16.xpose.msra.mxu0 0
        %713 = vmatpush.bf16.xpose.msra.mxu0 0
        %714 = vmatpush.bf16.xpose.msra.mxu0 0
        %715 = vmatpush.bf16.xpose.msra.mxu0 0
        %716 = vmatpush.bf16.xpose.msra.mxu0 0
        %717 = vmatpush.bf16.xpose.msra.mxu0 0
        %718 = vmatpush.bf16.xpose.msra.mxu0 0
        %719 = vmatpush.bf16.xpose.msra.mxu0 %v710
        %720 = vmatmul.bf16.gmra.mxu0 %v707
        %v721 = vpop.f32.mrf.mxu0
        %v722 = vadd.f32 0.0, %v721
        %v723 = vpop.f32.mrf.mxu0
        %724 = vdwg.mxu0
        %v725 = vsel %vm646, %v722, -inf
        %726 = vmax.xlane.f32.xlu0 %v725
        %v727 = vpop.xlane.xlu0 %726
        %v728 = vsub.f32 %v722, %v727
        %v729 = vmul.f32 %v728, 1.442695
        %v730 = vpow.pop %v729
        %v731 = vsel %vm646, %v730, 0.0
        %732 = vadd.xlane.f32.xlu0 %v731
        %v733 = vpop.xlane.xlu0 %732
        %v734 = vrcp.pop %v733
        %v735 = vmul.f32 %v730, %v734
        %v736 = vpack.c.bf16 %v735, %v735
        %738 = vrot.lane.b32.xlu0 %v645, 120
        %v739 = vpop.permute.xlu0 %738
        %v741 = vsel %vm646, %v736, 0
        %v744 = vsel %vm681, %v739, 0
        %746 = vmatpush.bf16.msra.mxu0 0
        %747 = vmatpush.bf16.msra.mxu0 0
        %748 = vmatpush.bf16.msra.mxu0 0
        %749 = vmatpush.bf16.msra.mxu0 0
        %750 = vmatpush.bf16.msra.mxu0 0
        %751 = vmatpush.bf16.msra.mxu0 0
        %752 = vmatpush.bf16.msra.mxu0 0
        %753 = vmatpush.bf16.msra.mxu0 %v744
        %754 = vmatmul.bf16.gmra.mxu0 %v741
        %v755 = vpop.f32.mrf.mxu0
        %v756 = vadd.f32 0.0, %v755
        %v757 = vpop.f32.mrf.mxu0
        %758 = vdwg.mxu0
        %v759 = vpack.c.bf16 %v756, %v756
        %s760 = scalar_lea.vmem %s6, 4
        %v761 = vld [vmem:[%s760] sm:$0xf]
        %v763 = vsel %vm646, %v759, 0
        %v766 = vsel %vm681, %v761, 0
        %768 = vmatpush.bf16.msra.mxu0 0
        %769 = vmatpush.bf16.msra.mxu0 0
        %770 = vmatpush.bf16.msra.mxu0 0
        %771 = vmatpush.bf16.msra.mxu0 0
        %772 = vmatpush.bf16.msra.mxu0 0
        %773 = vmatpush.bf16.msra.mxu0 0
        %774 = vmatpush.bf16.msra.mxu0 0
        %775 = vmatpush.bf16.msra.mxu0 %v766
        %776 = vmatmul.bf16.gmra.mxu0 %v763
        %v777 = vpop.f32.mrf.mxu0
        %v778 = vadd.f32 0.0, %v777
        %v779 = vpop.f32.mrf.mxu0
        %780 = vdwg.mxu0
        %v782 = vsel %vm646, %v698, 0
        %v785 = vsel %vm681, %v699, 0
        %787 = vmatpush.bf16.msra.mxu0 0
        %788 = vmatpush.bf16.msra.mxu0 0
        %789 = vmatpush.bf16.msra.mxu0 0
        %790 = vmatpush.bf16.msra.mxu0 0
        %791 = vmatpush.bf16.msra.mxu0 0
        %792 = vmatpush.bf16.msra.mxu0 0
        %793 = vmatpush.bf16.msra.mxu0 0
        %794 = vmatpush.bf16.msra.mxu0 %v785
        %795 = vmatmul.bf16.gmra.mxu0 %v782
        %v796 = vpop.f32.mrf.mxu0
        %v797 = vadd.f32 %v778, %v796
        %v798 = vpop.f32.mrf.mxu0
        %799 = vdwg.mxu0
        %800 = vrot.lane.b32.xlu0 %v643, 112
        %v801 = vpop.permute.xlu0 %800
        %802 = vrot.lane.b32.xlu0 %v644, 112
        %v803 = vpop.permute.xlu0 %802
        %v805 = vsel %vm646, %v801, 0
        %v808 = vsel %vm646, %v803, 0
        %810 = vmatpush.bf16.xpose.msra.mxu0 0
        %811 = vmatpush.bf16.xpose.msra.mxu0 0
        %812 = vmatpush.bf16.xpose.msra.mxu0 0
        %813 = vmatpush.bf16.xpose.msra.mxu0 0
        %814 = vmatpush.bf16.xpose.msra.mxu0 0
        %815 = vmatpush.bf16.xpose.msra.mxu0 0
        %816 = vmatpush.bf16.xpose.msra.mxu0 0
        %817 = vmatpush.bf16.xpose.msra.mxu0 %v808
        %818 = vmatmul.bf16.gmra.mxu0 %v805
        %v819 = vpop.f32.mrf.mxu0
        %v820 = vadd.f32 0.0, %v819
        %v821 = vpop.f32.mrf.mxu0
        %822 = vdwg.mxu0
        %v823 = vsel %vm646, %v820, -inf
        %824 = vmax.xlane.f32.xlu0 %v823
        %v825 = vpop.xlane.xlu0 %824
        %v826 = vsub.f32 %v820, %v825
        %v827 = vmul.f32 %v826, 1.442695
        %v828 = vpow.pop %v827
        %v829 = vsel %vm646, %v828, 0.0
        %830 = vadd.xlane.f32.xlu0 %v829
        %v831 = vpop.xlane.xlu0 %830
        %v832 = vrcp.pop %v831
        %v833 = vmul.f32 %v828, %v832
        %v834 = vpack.c.bf16 %v833, %v833
        %835 = vrot.lane.b32.xlu0 %v645, 112
        %v836 = vpop.permute.xlu0 %835
        %v838 = vsel %vm646, %v834, 0
        %v841 = vsel %vm681, %v836, 0
        %843 = vmatpush.bf16.msra.mxu0 0
        %844 = vmatpush.bf16.msra.mxu0 0
        %845 = vmatpush.bf16.msra.mxu0 0
        %846 = vmatpush.bf16.msra.mxu0 0
        %847 = vmatpush.bf16.msra.mxu0 0
        %848 = vmatpush.bf16.msra.mxu0 0
        %849 = vmatpush.bf16.msra.mxu0 0
        %850 = vmatpush.bf16.msra.mxu0 %v841
        %851 = vmatmul.bf16.gmra.mxu0 %v838
        %v852 = vpop.f32.mrf.mxu0
        %v853 = vadd.f32 0.0, %v852
        %v854 = vpop.f32.mrf.mxu0
        %855 = vdwg.mxu0
        %v856 = vpack.c.bf16 %v853, %v853
        %s857 = scalar_lea.vmem %s6, 8
        %v858 = vld [vmem:[%s857] sm:$0xf]
        %v860 = vsel %vm646, %v856, 0
        %v863 = vsel %vm681, %v858, 0
        %865 = vmatpush.bf16.msra.mxu0 0
        %866 = vmatpush.bf16.msra.mxu0 0
        %867 = vmatpush.bf16.msra.mxu0 0
        %868 = vmatpush.bf16.msra.mxu0 0
        %869 = vmatpush.bf16.msra.mxu0 0
        %870 = vmatpush.bf16.msra.mxu0 0
        %871 = vmatpush.bf16.msra.mxu0 0
        %872 = vmatpush.bf16.msra.mxu0 %v863
        %873 = vmatmul.bf16.gmra.mxu0 %v860
        %v874 = vpop.f32.mrf.mxu0
        %v875 = vadd.f32 0.0, %v874
        %v876 = vpop.f32.mrf.mxu0
        %877 = vdwg.mxu0
        %v878 = vadd.f32 %v797, %v875
        %879 = vrot.lane.b32.xlu0 %v643, 104
        %v880 = vpop.permute.xlu0 %879
        %881 = vrot.lane.b32.xlu0 %v644, 104
        %v882 = vpop.permute.xlu0 %881
        %v884 = vsel %vm646, %v880, 0
        %v887 = vsel %vm646, %v882, 0
        %889 = vmatpush.bf16.xpose.msra.mxu0 0
        %890 = vmatpush.bf16.xpose.msra.mxu0 0
        %891 = vmatpush.bf16.xpose.msra.mxu0 0
        %892 = vmatpush.bf16.xpose.msra.mxu0 0
        %893 = vmatpush.bf16.xpose.msra.mxu0 0
        %894 = vmatpush.bf16.xpose.msra.mxu0 0
        %895 = vmatpush.bf16.xpose.msra.mxu0 0
        %896 = vmatpush.bf16.xpose.msra.mxu0 %v887
        %897 = vmatmul.bf16.gmra.mxu0 %v884
        %v898 = vpop.f32.mrf.mxu0
        %v899 = vadd.f32 0.0, %v898
        %v900 = vpop.f32.mrf.mxu0
        %901 = vdwg.mxu0
        %v902 = vsel %vm646, %v899, -inf
        %903 = vmax.xlane.f32.xlu0 %v902
        %v904 = vpop.xlane.xlu0 %903
        %v905 = vsub.f32 %v899, %v904
        %v906 = vmul.f32 %v905, 1.442695
        %v907 = vpow.pop %v906
        %v908 = vsel %vm646, %v907, 0.0
        %909 = vadd.xlane.f32.xlu0 %v908
        %v910 = vpop.xlane.xlu0 %909
        %v911 = vrcp.pop %v910
        %v912 = vmul.f32 %v907, %v911
        %v913 = vpack.c.bf16 %v912, %v912
        %914 = vrot.lane.b32.xlu0 %v645, 104
        %v915 = vpop.permute.xlu0 %914
        %v917 = vsel %vm646, %v913, 0
        %v920 = vsel %vm681, %v915, 0
        %922 = vmatpush.bf16.msra.mxu0 0
        %923 = vmatpush.bf16.msra.mxu0 0
        %924 = vmatpush.bf16.msra.mxu0 0
        %925 = vmatpush.bf16.msra.mxu0 0
        %926 = vmatpush.bf16.msra.mxu0 0
        %927 = vmatpush.bf16.msra.mxu0 0
        %928 = vmatpush.bf16.msra.mxu0 0
        %929 = vmatpush.bf16.msra.mxu0 %v920
        %930 = vmatmul.bf16.gmra.mxu0 %v917
        %v931 = vpop.f32.mrf.mxu0
        %v932 = vadd.f32 0.0, %v931
        %v933 = vpop.f32.mrf.mxu0
        %934 = vdwg.mxu0
        %v935 = vpack.c.bf16 %v932, %v932
        %s936 = scalar_lea.vmem %s6, 12
        %v937 = vld [vmem:[%s936] sm:$0xf]
        %v939 = vsel %vm646, %v935, 0
        %v942 = vsel %vm681, %v937, 0
        %944 = vmatpush.bf16.msra.mxu0 0
        %945 = vmatpush.bf16.msra.mxu0 0
        %946 = vmatpush.bf16.msra.mxu0 0
        %947 = vmatpush.bf16.msra.mxu0 0
        %948 = vmatpush.bf16.msra.mxu0 0
        %949 = vmatpush.bf16.msra.mxu0 0
        %950 = vmatpush.bf16.msra.mxu0 0
        %951 = vmatpush.bf16.msra.mxu0 %v942
        %952 = vmatmul.bf16.gmra.mxu0 %v939
        %v953 = vpop.f32.mrf.mxu0
        %v954 = vadd.f32 0.0, %v953
        %v955 = vpop.f32.mrf.mxu0
        %956 = vdwg.mxu0
        %v957 = vadd.f32 %v878, %v954
        %v958 = vld [vmem:[%s7] sm:$0x1]
        %v959 = vperm.slane %v958, 0
        %v960 = vadd.f32 %v957, %v959
        %v961 = vld [vmem:[#allocation5 + $0x1] sm:$0x1]
        %v962 = vld [vmem:[#allocation7 + $0x1] sm:$0x1]
        %v963 = vperm.slane %v961, 0
        %v964 = vmul.f32 %v547, %v963
        %v965 = vperm.slane %v962, 0
        %v966 = vadd.f32 %v964, %v965
        %v967 = vpack.c.bf16 %v966, %v966
        %s968 = scalar_lea.vmem %s3, 16
        %v969 = vld [vmem:[%s968] sm:$0xf]
        %v970 = vld [vmem:[%s968 + $0x4] sm:$0xf]
        %v971 = vld [vmem:[%s968 + $0x8] sm:$0xf]
        %v972 = vld [vmem:[%s968 + $0xc] sm:$0xf]
        %v977 = vunpack.c.l.b16 %v969
        %v978 = vunpack.c.l.b16 %v970
        %v979 = vunpack.c.l.b16 %v971
        %v980 = vunpack.c.l.b16 %v972
        %v981 = vpack.c.b16 %v978, %v977
        %v982 = vpack.c.b16 %v980, %v979
        %v986 = vsel %vm518, %v967, 0
        %988 = vmatpush.bf16.msra.mxu0 0
        %989 = vmatpush.bf16.msra.mxu0 0
        %990 = vmatpush.bf16.msra.mxu0 0
        %991 = vmatpush.bf16.msra.mxu0 0
        %992 = vmatpush.bf16.msra.mxu0 0
        %993 = vmatpush.bf16.msra.mxu0 0
        %994 = vmatpush.bf16.msra.mxu0 %v982
        %995 = vmatpush.bf16.msra.mxu0 %v981
        %996 = vmatmul.bf16.gmra.mxu0 %v986
        %v997 = vpop.f32.mrf.mxu0
        %v998 = vadd.f32 0.0, %v997
        %v999 = vpop.f32.mrf.mxu0
        %1000 = vdwg.mxu0
        %s1001 = scalar_lea.vmem %s4, 16
        %v1002 = vld [vmem:[%s1001] sm:$0xf]
        %v1003 = vld [vmem:[%s1001 + $0x4] sm:$0xf]
        %v1004 = vld [vmem:[%s1001 + $0x8] sm:$0xf]
        %v1005 = vld [vmem:[%s1001 + $0xc] sm:$0xf]
        %v1010 = vunpack.c.l.b16 %v1002
        %v1011 = vunpack.c.l.b16 %v1003
        %v1012 = vunpack.c.l.b16 %v1004
        %v1013 = vunpack.c.l.b16 %v1005
        %v1014 = vpack.c.b16 %v1011, %v1010
        %v1015 = vpack.c.b16 %v1013, %v1012
        %1018 = vmatpush.bf16.msra.mxu0 0
        %1019 = vmatpush.bf16.msra.mxu0 0
        %1020 = vmatpush.bf16.msra.mxu0 0
        %1021 = vmatpush.bf16.msra.mxu0 0
        %1022 = vmatpush.bf16.msra.mxu0 0
        %1023 = vmatpush.bf16.msra.mxu0 0
        %1024 = vmatpush.bf16.msra.mxu0 %v1015
        %1025 = vmatpush.bf16.msra.mxu0 %v1014
        %1026 = vmatmul.bf16.gmra.mxu0 %v986
        %v1027 = vpop.f32.mrf.mxu0
        %v1028 = vadd.f32 0.0, %v1027
        %v1029 = vpop.f32.mrf.mxu0
        %1030 = vdwg.mxu0
        %s1031 = scalar_lea.vmem %s5, 16
        %v1032 = vld [vmem:[%s1031] sm:$0xf]
        %v1033 = vld [vmem:[%s1031 + $0x4] sm:$0xf]
        %v1034 = vld [vmem:[%s1031 + $0x8] sm:$0xf]
        %v1035 = vld [vmem:[%s1031 + $0xc] sm:$0xf]
        %v1040 = vunpack.c.l.b16 %v1032
        %v1041 = vunpack.c.l.b16 %v1033
        %v1042 = vunpack.c.l.b16 %v1034
        %v1043 = vunpack.c.l.b16 %v1035
        %v1044 = vpack.c.b16 %v1041, %v1040
        %v1045 = vpack.c.b16 %v1043, %v1042
        %1048 = vmatpush.bf16.msra.mxu0 0
        %1049 = vmatpush.bf16.msra.mxu0 0
        %1050 = vmatpush.bf16.msra.mxu0 0
        %1051 = vmatpush.bf16.msra.mxu0 0
        %1052 = vmatpush.bf16.msra.mxu0 0
        %1053 = vmatpush.bf16.msra.mxu0 0
        %1054 = vmatpush.bf16.msra.mxu0 %v1045
        %1055 = vmatpush.bf16.msra.mxu0 %v1044
        %1056 = vmatmul.bf16.gmra.mxu0 %v986
        %v1057 = vpop.f32.mrf.mxu0
        %v1058 = vadd.f32 0.0, %v1057
        %v1059 = vpop.f32.mrf.mxu0
        %1060 = vdwg.mxu0
        %v1061 = vpack.c.bf16 %v998, %v998
        %v1062 = vpack.c.bf16 %v1028, %v1028
        %v1063 = vpack.c.bf16 %v1058, %v1058
        %v1065 = vsel %vm646, %v1061, 0
        %v1068 = vsel %vm646, %v1062, 0
        %1070 = vmatpush.bf16.xpose.msra.mxu0 0
        %1071 = vmatpush.bf16.xpose.msra.mxu0 0
        %1072 = vmatpush.bf16.xpose.msra.mxu0 0
        %1073 = vmatpush.bf16.xpose.msra.mxu0 0
        %1074 = vmatpush.bf16.xpose.msra.mxu0 0
        %1075 = vmatpush.bf16.xpose.msra.mxu0 0
        %1076 = vmatpush.bf16.xpose.msra.mxu0 0
        %1077 = vmatpush.bf16.xpose.msra.mxu0 %v1068
        %1078 = vmatmul.bf16.gmra.mxu0 %v1065
        %v1079 = vpop.f32.mrf.mxu0
        %v1080 = vadd.f32 0.0, %v1079
        %v1081 = vpop.f32.mrf.mxu0
        %1082 = vdwg.mxu0
        %v1083 = vsel %vm646, %v1080, -inf
        %1084 = vmax.xlane.f32.xlu0 %v1083
        %v1085 = vpop.xlane.xlu0 %1084
        %v1086 = vsub.f32 %v1080, %v1085
        %v1087 = vmul.f32 %v1086, 1.442695
        %v1088 = vpow.pop %v1087
        %v1089 = vsel %vm646, %v1088, 0.0
        %1090 = vadd.xlane.f32.xlu0 %v1089
        %v1091 = vpop.xlane.xlu0 %1090
        %v1092 = vrcp.pop %v1091
        %v1093 = vmul.f32 %v1088, %v1092
        %v1094 = vpack.c.bf16 %v1093, %v1093
        %v1096 = vsel %vm646, %v1094, 0
        %v1099 = vsel %vm681, %v1063, 0
        %1101 = vmatpush.bf16.msra.mxu0 0
        %1102 = vmatpush.bf16.msra.mxu0 0
        %1103 = vmatpush.bf16.msra.mxu0 0
        %1104 = vmatpush.bf16.msra.mxu0 0
        %1105 = vmatpush.bf16.msra.mxu0 0
        %1106 = vmatpush.bf16.msra.mxu0 0
        %1107 = vmatpush.bf16.msra.mxu0 0
        %1108 = vmatpush.bf16.msra.mxu0 %v1099
        %1109 = vmatmul.bf16.gmra.mxu0 %v1096
        %v1110 = vpop.f32.mrf.mxu0
        %v1111 = vadd.f32 0.0, %v1110
        %v1112 = vpop.f32.mrf.mxu0
        %1113 = vdwg.mxu0
        %v1114 = vpack.c.bf16 %v1111, %v1111
        %s1115 = scalar_lea.vmem %s6, 16
        %v1116 = vld [vmem:[%s1115] sm:$0xf]
        %v1118 = vsel %vm646, %v1114, 0
        %v1121 = vsel %vm681, %v1116, 0
        %1123 = vmatpush.bf16.msra.mxu0 0
        %1124 = vmatpush.bf16.msra.mxu0 0
        %1125 = vmatpush.bf16.msra.mxu0 0
        %1126 = vmatpush.bf16.msra.mxu0 0
        %1127 = vmatpush.bf16.msra.mxu0 0
        %1128 = vmatpush.bf16.msra.mxu0 0
        %1129 = vmatpush.bf16.msra.mxu0 0
        %1130 = vmatpush.bf16.msra.mxu0 %v1121
        %1131 = vmatmul.bf16.gmra.mxu0 %v1118
        %v1132 = vpop.f32.mrf.mxu0
        %v1133 = vadd.f32 0.0, %v1132
        %v1134 = vpop.f32.mrf.mxu0
        %1135 = vdwg.mxu0
        %v1136 = vadd.f32 %v960, %v1133
        %1138 = vrot.lane.b32.xlu0 %v1061, 120
        %v1139 = vpop.permute.xlu0 %1138
        %1141 = vrot.lane.b32.xlu0 %v1062, 120
        %v1142 = vpop.permute.xlu0 %1141
        %v1144 = vsel %vm646, %v1139, 0
        %v1147 = vsel %vm646, %v1142, 0
        %1149 = vmatpush.bf16.xpose.msra.mxu0 0
        %1150 = vmatpush.bf16.xpose.msra.mxu0 0
        %1151 = vmatpush.bf16.xpose.msra.mxu0 0
        %1152 = vmatpush.bf16.xpose.msra.mxu0 0
        %1153 = vmatpush.bf16.xpose.msra.mxu0 0
        %1154 = vmatpush.bf16.xpose.msra.mxu0 0
        %1155 = vmatpush.bf16.xpose.msra.mxu0 0
        %1156 = vmatpush.bf16.xpose.msra.mxu0 %v1147
        %1157 = vmatmul.bf16.gmra.mxu0 %v1144
        %v1158 = vpop.f32.mrf.mxu0
        %v1159 = vadd.f32 0.0, %v1158
        %v1160 = vpop.f32.mrf.mxu0
        %1161 = vdwg.mxu0
        %v1162 = vsel %vm646, %v1159, -inf
        %1163 = vmax.xlane.f32.xlu0 %v1162
        %v1164 = vpop.xlane.xlu0 %1163
        %v1165 = vsub.f32 %v1159, %v1164
        %v1166 = vmul.f32 %v1165, 1.442695
        %v1167 = vpow.pop %v1166
        %v1168 = vsel %vm646, %v1167, 0.0
        %1169 = vadd.xlane.f32.xlu0 %v1168
        %v1170 = vpop.xlane.xlu0 %1169
        %v1171 = vrcp.pop %v1170
        %v1172 = vmul.f32 %v1167, %v1171
        %v1173 = vpack.c.bf16 %v1172, %v1172
        %1175 = vrot.lane.b32.xlu0 %v1063, 120
        %v1176 = vpop.permute.xlu0 %1175
        %v1178 = vsel %vm646, %v1173, 0
        %v1181 = vsel %vm681, %v1176, 0
        %1183 = vmatpush.bf16.msra.mxu0 0
        %1184 = vmatpush.bf16.msra.mxu0 0
        %1185 = vmatpush.bf16.msra.mxu0 0
        %1186 = vmatpush.bf16.msra.mxu0 0
        %1187 = vmatpush.bf16.msra.mxu0 0
        %1188 = vmatpush.bf16.msra.mxu0 0
        %1189 = vmatpush.bf16.msra.mxu0 0
        %1190 = vmatpush.bf16.msra.mxu0 %v1181
        %1191 = vmatmul.bf16.gmra.mxu0 %v1178
        %v1192 = vpop.f32.mrf.mxu0
        %v1193 = vadd.f32 0.0, %v1192
        %v1194 = vpop.f32.mrf.mxu0
        %1195 = vdwg.mxu0
        %v1196 = vpack.c.bf16 %v1193, %v1193
        %s1197 = scalar_lea.vmem %s6, 20
        %v1198 = vld [vmem:[%s1197] sm:$0xf]
        %v1200 = vsel %vm646, %v1196, 0
        %v1203 = vsel %vm681, %v1198, 0
        %1205 = vmatpush.bf16.msra.mxu0 0
        %1206 = vmatpush.bf16.msra.mxu0 0
        %1207 = vmatpush.bf16.msra.mxu0 0
        %1208 = vmatpush.bf16.msra.mxu0 0
        %1209 = vmatpush.bf16.msra.mxu0 0
        %1210 = vmatpush.bf16.msra.mxu0 0
        %1211 = vmatpush.bf16.msra.mxu0 0
        %1212 = vmatpush.bf16.msra.mxu0 %v1203
        %1213 = vmatmul.bf16.gmra.mxu0 %v1200
        %v1214 = vpop.f32.mrf.mxu0
        %v1215 = vadd.f32 0.0, %v1214
        %v1216 = vpop.f32.mrf.mxu0
        %1217 = vdwg.mxu0
        %v1218 = vadd.f32 %v1136, %v1215
        %1219 = vrot.lane.b32.xlu0 %v1061, 112
        %v1220 = vpop.permute.xlu0 %1219
        %1221 = vrot.lane.b32.xlu0 %v1062, 112
        %v1222 = vpop.permute.xlu0 %1221
        %v1224 = vsel %vm646, %v1220, 0
        %v1227 = vsel %vm646, %v1222, 0
        %1229 = vmatpush.bf16.xpose.msra.mxu0 0
        %1230 = vmatpush.bf16.xpose.msra.mxu0 0
        %1231 = vmatpush.bf16.xpose.msra.mxu0 0
        %1232 = vmatpush.bf16.xpose.msra.mxu0 0
        %1233 = vmatpush.bf16.xpose.msra.mxu0 0
        %1234 = vmatpush.bf16.xpose.msra.mxu0 0
        %1235 = vmatpush.bf16.xpose.msra.mxu0 0
        %1236 = vmatpush.bf16.xpose.msra.mxu0 %v1227
        %1237 = vmatmul.bf16.gmra.mxu0 %v1224
        %v1238 = vpop.f32.mrf.mxu0
        %v1239 = vadd.f32 0.0, %v1238
        %v1240 = vpop.f32.mrf.mxu0
        %1241 = vdwg.mxu0
        %v1242 = vsel %vm646, %v1239, -inf
        %1243 = vmax.xlane.f32.xlu0 %v1242
        %v1244 = vpop.xlane.xlu0 %1243
        %v1245 = vsub.f32 %v1239, %v1244
        %v1246 = vmul.f32 %v1245, 1.442695
        %v1247 = vpow.pop %v1246
        %v1248 = vsel %vm646, %v1247, 0.0
        %1249 = vadd.xlane.f32.xlu0 %v1248
        %v1250 = vpop.xlane.xlu0 %1249
        %v1251 = vrcp.pop %v1250
        %v1252 = vmul.f32 %v1247, %v1251
        %v1253 = vpack.c.bf16 %v1252, %v1252
        %1254 = vrot.lane.b32.xlu0 %v1063, 112
        %v1255 = vpop.permute.xlu0 %1254
        %v1257 = vsel %vm646, %v1253, 0
        %v1260 = vsel %vm681, %v1255, 0
        %1262 = vmatpush.bf16.msra.mxu0 0
        %1263 = vmatpush.bf16.msra.mxu0 0
        %1264 = vmatpush.bf16.msra.mxu0 0
        %1265 = vmatpush.bf16.msra.mxu0 0
        %1266 = vmatpush.bf16.msra.mxu0 0
        %1267 = vmatpush.bf16.msra.mxu0 0
        %1268 = vmatpush.bf16.msra.mxu0 0
        %1269 = vmatpush.bf16.msra.mxu0 %v1260
        %1270 = vmatmul.bf16.gmra.mxu0 %v1257
        %v1271 = vpop.f32.mrf.mxu0
        %v1272 = vadd.f32 0.0, %v1271
        %v1273 = vpop.f32.mrf.mxu0
        %1274 = vdwg.mxu0
        %v1275 = vpack.c.bf16 %v1272, %v1272
        %s1276 = scalar_lea.vmem %s6, 24
        %v1277 = vld [vmem:[%s1276] sm:$0xf]
        %v1279 = vsel %vm646, %v1275, 0
        %v1282 = vsel %vm681, %v1277, 0
        %1284 = vmatpush.bf16.msra.mxu0 0
        %1285 = vmatpush.bf16.msra.mxu0 0
        %1286 = vmatpush.bf16.msra.mxu0 0
        %1287 = vmatpush.bf16.msra.mxu0 0
        %1288 = vmatpush.bf16.msra.mxu0 0
        %1289 = vmatpush.bf16.msra.mxu0 0
        %1290 = vmatpush.bf16.msra.mxu0 0
        %1291 = vmatpush.bf16.msra.mxu0 %v1282
        %1292 = vmatmul.bf16.gmra.mxu0 %v1279
        %v1293 = vpop.f32.mrf.mxu0
        %v1294 = vadd.f32 0.0, %v1293
        %v1295 = vpop.f32.mrf.mxu0
        %1296 = vdwg.mxu0
        %v1297 = vadd.f32 %v1218, %v1294
        %1298 = vrot.lane.b32.xlu0 %v1061, 104
        %v1299 = vpop.permute.xlu0 %1298
        %1300 = vrot.lane.b32.xlu0 %v1062, 104
        %v1301 = vpop.permute.xlu0 %1300
        %v1303 = vsel %vm646, %v1299, 0
        %v1306 = vsel %vm646, %v1301, 0
        %1308 = vmatpush.bf16.xpose.msra.mxu0 0
        %1309 = vmatpush.bf16.xpose.msra.mxu0 0
        %1310 = vmatpush.bf16.xpose.msra.mxu0 0
        %1311 = vmatpush.bf16.xpose.msra.mxu0 0
        %1312 = vmatpush.bf16.xpose.msra.mxu0 0
        %1313 = vmatpush.bf16.xpose.msra.mxu0 0
        %1314 = vmatpush.bf16.xpose.msra.mxu0 0
        %1315 = vmatpush.bf16.xpose.msra.mxu0 %v1306
        %1316 = vmatmul.bf16.gmra.mxu0 %v1303
        %v1317 = vpop.f32.mrf.mxu0
        %v1318 = vadd.f32 0.0, %v1317
        %v1319 = vpop.f32.mrf.mxu0
        %1320 = vdwg.mxu0
        %v1321 = vsel %vm646, %v1318, -inf
        %1322 = vmax.xlane.f32.xlu0 %v1321
        %v1323 = vpop.xlane.xlu0 %1322
        %v1324 = vsub.f32 %v1318, %v1323
        %v1325 = vmul.f32 %v1324, 1.442695
        %v1326 = vpow.pop %v1325
        %v1327 = vsel %vm646, %v1326, 0.0
        %1328 = vadd.xlane.f32.xlu0 %v1327
        %v1329 = vpop.xlane.xlu0 %1328
        %v1330 = vrcp.pop %v1329
        %v1331 = vmul.f32 %v1326, %v1330
        %v1332 = vpack.c.bf16 %v1331, %v1331
        %1333 = vrot.lane.b32.xlu0 %v1063, 104
        %v1334 = vpop.permute.xlu0 %1333
        %v1336 = vsel %vm646, %v1332, 0
        %v1339 = vsel %vm681, %v1334, 0
        %1341 = vmatpush.bf16.msra.mxu0 0
        %1342 = vmatpush.bf16.msra.mxu0 0
        %1343 = vmatpush.bf16.msra.mxu0 0
        %1344 = vmatpush.bf16.msra.mxu0 0
        %1345 = vmatpush.bf16.msra.mxu0 0
        %1346 = vmatpush.bf16.msra.mxu0 0
        %1347 = vmatpush.bf16.msra.mxu0 0
        %1348 = vmatpush.bf16.msra.mxu0 %v1339
        %1349 = vmatmul.bf16.gmra.mxu0 %v1336
        %v1350 = vpop.f32.mrf.mxu0
        %v1351 = vadd.f32 0.0, %v1350
        %v1352 = vpop.f32.mrf.mxu0
        %1353 = vdwg.mxu0
        %v1354 = vpack.c.bf16 %v1351, %v1351
        %s1355 = scalar_lea.vmem %s6, 28
        %v1356 = vld [vmem:[%s1355] sm:$0xf]
        %v1358 = vsel %vm646, %v1354, 0
        %v1361 = vsel %vm681, %v1356, 0
        %1363 = vmatpush.bf16.msra.mxu0 0
        %1364 = vmatpush.bf16.msra.mxu0 0
        %1365 = vmatpush.bf16.msra.mxu0 0
        %1366 = vmatpush.bf16.msra.mxu0 0
        %1367 = vmatpush.bf16.msra.mxu0 0
        %1368 = vmatpush.bf16.msra.mxu0 0
        %1369 = vmatpush.bf16.msra.mxu0 0
        %1370 = vmatpush.bf16.msra.mxu0 %v1361
        %1371 = vmatmul.bf16.gmra.mxu0 %v1358
        %v1372 = vpop.f32.mrf.mxu0
        %v1373 = vadd.f32 0.0, %v1372
        %v1374 = vpop.f32.mrf.mxu0
        %1375 = vdwg.mxu0
        %v1376 = vadd.f32 %v1297, %v1373
        %v1377 = vld [vmem:[%s7 + $0x1] sm:$0x1]
        %v1378 = vperm.slane %v1377, 0
        %v1379 = vadd.f32 %v1376, %v1378
        %v1380 = vadd.f32 %v515, %v1379
        %v1381 = vld [vmem:[%s8] sm:$0x1]
        %v1382 = vld [vmem:[%s9] sm:$0x1]
        %v1383 = vsel %vm518, %v1380, 0.0
        %1384 = vadd.xlane.f32.xlu0 %v1383
        %v1385 = vpop.xlane.xlu0 %1384
        %v1386 = vmul.f32 %v1385, %v528
        %v1387 = vsub.f32 %v1380, %v1386
        %v1388 = vmul.f32 %v1387, %v1387
        %v1389 = vsel %vm518, %v1388, 0.0
        %1390 = vadd.xlane.f32.xlu0 %v1389
        %v1391 = vpop.xlane.xlu0 %1390
        %v1392 = vmul.f32 %v1391, %v528
        %v1393 = vadd.f32 %v1392, 1e-05
        %v1394 = vrsqrt.pop %v1393
        %v1395 = vmul.f32 %v1394, %v1393
        %v1396 = vmul.f32 %v1395, %v1394
        %v1397 = vmul.f32 0.5, %v1396
        %v1398 = vsub.f32 1.5, %v1397
        %v1399 = vmul.f32 %v1394, %v1398
        %vm1400 = vweird.f32 %v1393
        %vm1401 = vweird.f32 %v1394
        %vm1402 = vmor %vm1400, %vm1401
        %v1403 = vsel %vm1402, %v1394, %v1399
        %v1404 = vmul.f32 %v1387, %v1403
        %v1405 = vperm.slane %v1381, 0
        %v1406 = vmul.f32 %v1404, %v1405
        %v1407 = vperm.slane %v1382, 0
        %v1408 = vadd.f32 %v1406, %v1407
        %v1409 = vpack.c.bf16 %v1408, %v1408
        %v1410 = vld [vmem:[%s10] sm:$0xf]
        %v1411 = vld [vmem:[%s10 + $0x4] sm:$0xf]
        %v1412 = vld [vmem:[%s10 + $0x8] sm:$0xf]
        %v1413 = vld [vmem:[%s10 + $0xc] sm:$0xf]
        %v1414 = vld [vmem:[%s11] sm:$0x1]
        %v1415 = vperm.slane %v1414, 0
        %v1420 = vunpack.c.l.b16 %v1410
        %v1421 = vunpack.c.l.b16 %v1411
        %v1422 = vunpack.c.l.b16 %v1412
        %v1423 = vunpack.c.l.b16 %v1413
        %v1424 = vpack.c.b16 %v1421, %v1420
        %v1425 = vpack.c.b16 %v1423, %v1422
        %v1429 = vsel %vm518, %v1409, 0
        %1431 = vmatpush.bf16.msra.mxu0 0
        %1432 = vmatpush.bf16.msra.mxu0 0
        %1433 = vmatpush.bf16.msra.mxu0 0
        %1434 = vmatpush.bf16.msra.mxu0 0
        %1435 = vmatpush.bf16.msra.mxu0 0
        %1436 = vmatpush.bf16.msra.mxu0 0
        %1437 = vmatpush.bf16.msra.mxu0 %v1425
        %1438 = vmatpush.bf16.msra.mxu0 %v1424
        %1439 = vmatmul.bf16.gmra.mxu0 %v1429
        %v1440 = vpop.f32.mrf.mxu0
        %v1441 = vadd.f32 %v1415, %v1440
        %v1442 = vpop.f32.mrf.mxu0
        %1443 = vdwg.mxu0
        %v1444 = vmul.f32 %v1441, 0.5
        %v1445 = vmul.f32 %v1441, 0.70710677
        %v1446 = vmul.f32 %v1445, %v1445
        %v1447 = vmin.f32 16.0, %v1446
        %v1448 = vmul.f32 %v1447, 2.1237322e-06
        %v1449 = vadd.f32 %v1448, 0.00028619796
        %v1450 = vmul.f32 %v1447, %v1449
        %v1451 = vadd.f32 %v1450, 0.0036580483
        %v1452 = vmul.f32 %v1447, %v1451
        %v1453 = vadd.f32 %v1452, 0.05243302
        %v1454 = vmul.f32 %v1447, %v1453
        %v1455 = vadd.f32 %v1454, 0.18741608
        %v1456 = vmul.f32 %v1447, %v1455
        %v1457 = vadd.f32 %v1456, 1.1283791
        %v1458 = vmul.f32 %v1445, %v1457
        %v1459 = vmul.f32 %v1447, 3.8918573e-05
        %v1460 = vadd.f32 %v1459, 0.001143296
        %v1461 = vmul.f32 %v1447, %v1460
        %v1462 = vadd.f32 %v1461, 0.014752088
        %v1463 = vmul.f32 %v1447, %v1462
        %v1464 = vadd.f32 %v1463, 0.112945676
        %v1465 = vmul.f32 %v1447, %v1464
        %v1466 = vadd.f32 %v1465, 0.4994258
        %v1467 = vmul.f32 %v1447, %v1466
        %v1468 = vadd.f32 %v1467, 1.0
        %v1469 = vrcp.pop %v1468
        %v1470 = vmul.f32 %v1468, %v1469
        %v1471 = vsub.f32 1.0, %v1470
        %v1472 = vmul.f32 %v1469, %v1471
        %v1473 = vadd.f32 %v1469, %v1472
        %vm1474 = vweird.f32 %v1468
        %vm1475 = vweird.f32 %v1469
        %vm1476 = vmor %vm1474, %vm1475
        %v1477 = vsel %vm1476, %v1469, %v1473
        %v1478 = vand.u32 2147483647, %v1468
        %vm1479 = vcmp.eq.f32.partialorder %v1478, 8.507059e+37
        %v1480 = vand.u32 %v1468, 2147483648
        %v1481 = vor.u32 1.1754944e-38, %v1480
        %v1482 = vsel %vm1479, %v1481, %v1477
        %v1483 = vmul.f32 %v1458, %v1482
        %v1484 = vmin.f32 %v1483, 1.0
        %v1485 = vmax.f32 %v1484, -1.0
        %v1486 = vadd.f32 %v1485, 1.0
        %v1487 = vmul.f32 %v1444, %v1486
        %v1488 = vpack.c.bf16 %v1487, %v1487
        %v1489 = vld [vmem:[%s12] sm:$0xf]
        %v1490 = vld [vmem:[%s12 + $0x4] sm:$0xf]
        %v1491 = vld [vmem:[%s12 + $0x8] sm:$0xf]
        %v1492 = vld [vmem:[%s12 + $0xc] sm:$0xf]
        %v1493 = vld [vmem:[%s12 + $0x10] sm:$0xf]
        %v1494 = vld [vmem:[%s12 + $0x14] sm:$0xf]
        %v1495 = vld [vmem:[%s12 + $0x18] sm:$0xf]
        %v1496 = vld [vmem:[%s12 + $0x1c] sm:$0xf]
        %v1497 = vld [vmem:[%s12 + $0x20] sm:$0xf]
        %v1498 = vld [vmem:[%s12 + $0x24] sm:$0xf]
        %v1499 = vld [vmem:[%s12 + $0x28] sm:$0xf]
        %v1500 = vld [vmem:[%s12 + $0x2c] sm:$0xf]
        %v1501 = vld [vmem:[%s12 + $0x30] sm:$0xf]
        %v1502 = vld [vmem:[%s12 + $0x34] sm:$0xf]
        %v1503 = vld [vmem:[%s12 + $0x38] sm:$0xf]
        %v1504 = vld [vmem:[%s12 + $0x3c] sm:$0xf]
        %v1505 = vld [vmem:[%s13] sm:$0x1]
        %v1506 = vperm.slane %v1505, 0
        %v1523 = vunpack.c.l.b16 %v1489
        %v1524 = vunpack.c.l.b16 %v1490
        %v1525 = vunpack.c.l.b16 %v1491
        %v1526 = vunpack.c.l.b16 %v1492
        %v1527 = vunpack.c.l.b16 %v1493
        %v1528 = vunpack.c.l.b16 %v1494
        %v1529 = vunpack.c.l.b16 %v1495
        %v1530 = vunpack.c.l.b16 %v1496
        %v1531 = vunpack.c.l.b16 %v1497
        %v1532 = vunpack.c.l.b16 %v1498
        %v1533 = vunpack.c.l.b16 %v1499
        %v1534 = vunpack.c.l.b16 %v1500
        %v1535 = vunpack.c.l.b16 %v1501
        %v1536 = vunpack.c.l.b16 %v1502
        %v1537 = vunpack.c.l.b16 %v1503
        %v1538 = vunpack.c.l.b16 %v1504
        %v1539 = vpack.c.b16 %v1524, %v1523
        %v1540 = vpack.c.b16 %v1526, %v1525
        %v1541 = vpack.c.b16 %v1528, %v1527
        %v1542 = vpack.c.b16 %v1530, %v1529
        %v1543 = vpack.c.b16 %v1532, %v1531
        %v1544 = vpack.c.b16 %v1534, %v1533
        %v1545 = vpack.c.b16 %v1536, %v1535
        %v1546 = vpack.c.b16 %v1538, %v1537
        %1555 = vmatpush.bf16.msra.mxu0 %v1546
        %1556 = vmatpush.bf16.msra.mxu0 %v1545
        %1557 = vmatpush.bf16.msra.mxu0 %v1544
        %1558 = vmatpush.bf16.msra.mxu0 %v1543
        %1559 = vmatpush.bf16.msra.mxu0 %v1542
        %1560 = vmatpush.bf16.msra.mxu0 %v1541
        %1561 = vmatpush.bf16.msra.mxu0 %v1540
        %1562 = vmatpush.bf16.msra.mxu0 %v1539
        %1563 = vmatmul.bf16.gmra.mxu0 %v1488
        %v1564 = vpop.f32.mrf.mxu0
        %v1565 = vadd.f32 %v1506, %v1564
        %v1566 = vpop.f32.mrf.mxu0
        %1567 = vdwg.mxu0
        %v1568 = vld [vmem:[%s8 + $0x1] sm:$0x1]
        %v1569 = vld [vmem:[%s9 + $0x1] sm:$0x1]
        %v1570 = vperm.slane %v1568, 0
        %v1571 = vmul.f32 %v1404, %v1570
        %v1572 = vperm.slane %v1569, 0
        %v1573 = vadd.f32 %v1571, %v1572
        %v1574 = vpack.c.bf16 %v1573, %v1573
        %s1575 = scalar_lea.vmem %s10, 16
        %v1576 = vld [vmem:[%s1575] sm:$0xf]
        %v1577 = vld [vmem:[%s1575 + $0x4] sm:$0xf]
        %v1578 = vld [vmem:[%s1575 + $0x8] sm:$0xf]
        %v1579 = vld [vmem:[%s1575 + $0xc] sm:$0xf]
        %v1580 = vld [vmem:[%s11 + $0x1] sm:$0x1]
        %v1581 = vperm.slane %v1580, 0
        %v1586 = vunpack.c.l.b16 %v1576
        %v1587 = vunpack.c.l.b16 %v1577
        %v1588 = vunpack.c.l.b16 %v1578
        %v1589 = vunpack.c.l.b16 %v1579
        %v1590 = vpack.c.b16 %v1587, %v1586
        %v1591 = vpack.c.b16 %v1589, %v1588
        %v1595 = vsel %vm518, %v1574, 0
        %1597 = vmatpush.bf16.msra.mxu0 0
        %1598 = vmatpush.bf16.msra.mxu0 0
        %1599 = vmatpush.bf16.msra.mxu0 0
        %1600 = vmatpush.bf16.msra.mxu0 0
        %1601 = vmatpush.bf16.msra.mxu0 0
        %1602 = vmatpush.bf16.msra.mxu0 0
        %1603 = vmatpush.bf16.msra.mxu0 %v1591
        %1604 = vmatpush.bf16.msra.mxu0 %v1590
        %1605 = vmatmul.bf16.gmra.mxu0 %v1595
        %v1606 = vpop.f32.mrf.mxu0
        %v1607 = vadd.f32 %v1581, %v1606
        %v1608 = vpop.f32.mrf.mxu0
        %1609 = vdwg.mxu0
        %v1610 = vmul.f32 %v1607, 0.5
        %v1611 = vmul.f32 %v1607, 0.70710677
        %v1612 = vmul.f32 %v1611, %v1611
        %v1613 = vmin.f32 16.0, %v1612
        %v1614 = vmul.f32 %v1613, 2.1237322e-06
        %v1615 = vadd.f32 %v1614, 0.00028619796
        %v1616 = vmul.f32 %v1613, %v1615
        %v1617 = vadd.f32 %v1616, 0.0036580483
        %v1618 = vmul.f32 %v1613, %v1617
        %v1619 = vadd.f32 %v1618, 0.05243302
        %v1620 = vmul.f32 %v1613, %v1619
        %v1621 = vadd.f32 %v1620, 0.18741608
        %v1622 = vmul.f32 %v1613, %v1621
        %v1623 = vadd.f32 %v1622, 1.1283791
        %v1624 = vmul.f32 %v1611, %v1623
        %v1625 = vmul.f32 %v1613, 3.8918573e-05
        %v1626 = vadd.f32 %v1625, 0.001143296
        %v1627 = vmul.f32 %v1613, %v1626
        %v1628 = vadd.f32 %v1627, 0.014752088
        %v1629 = vmul.f32 %v1613, %v1628
        %v1630 = vadd.f32 %v1629, 0.112945676
        %v1631 = vmul.f32 %v1613, %v1630
        %v1632 = vadd.f32 %v1631, 0.4994258
        %v1633 = vmul.f32 %v1613, %v1632
        %v1634 = vadd.f32 %v1633, 1.0
        %v1635 = vrcp.pop %v1634
        %v1636 = vmul.f32 %v1634, %v1635
        %v1637 = vsub.f32 1.0, %v1636
        %v1638 = vmul.f32 %v1635, %v1637
        %v1639 = vadd.f32 %v1635, %v1638
        %vm1640 = vweird.f32 %v1634
        %vm1641 = vweird.f32 %v1635
        %vm1642 = vmor %vm1640, %vm1641
        %v1643 = vsel %vm1642, %v1635, %v1639
        %v1644 = vand.u32 2147483647, %v1634
        %vm1645 = vcmp.eq.f32.partialorder %v1644, 8.507059e+37
        %v1646 = vand.u32 %v1634, 2147483648
        %v1647 = vor.u32 1.1754944e-38, %v1646
        %v1648 = vsel %vm1645, %v1647, %v1643
        %v1649 = vmul.f32 %v1624, %v1648
        %v1650 = vmin.f32 %v1649, 1.0
        %v1651 = vmax.f32 %v1650, -1.0
        %v1652 = vadd.f32 %v1651, 1.0
        %v1653 = vmul.f32 %v1610, %v1652
        %v1654 = vpack.c.bf16 %v1653, %v1653
        %s1655 = scalar_lea.vmem %s12, 64
        %v1656 = vld [vmem:[%s1655] sm:$0xf]
        %v1657 = vld [vmem:[%s1655 + $0x4] sm:$0xf]
        %v1658 = vld [vmem:[%s1655 + $0x8] sm:$0xf]
        %v1659 = vld [vmem:[%s1655 + $0xc] sm:$0xf]
        %v1660 = vld [vmem:[%s1655 + $0x10] sm:$0xf]
        %v1661 = vld [vmem:[%s1655 + $0x14] sm:$0xf]
        %v1662 = vld [vmem:[%s1655 + $0x18] sm:$0xf]
        %v1663 = vld [vmem:[%s1655 + $0x1c] sm:$0xf]
        %v1664 = vld [vmem:[%s1655 + $0x20] sm:$0xf]
        %v1665 = vld [vmem:[%s1655 + $0x24] sm:$0xf]
        %v1666 = vld [vmem:[%s1655 + $0x28] sm:$0xf]
        %v1667 = vld [vmem:[%s1655 + $0x2c] sm:$0xf]
        %v1668 = vld [vmem:[%s1655 + $0x30] sm:$0xf]
        %v1669 = vld [vmem:[%s1655 + $0x34] sm:$0xf]
        %v1670 = vld [vmem:[%s1655 + $0x38] sm:$0xf]
        %v1671 = vld [vmem:[%s1655 + $0x3c] sm:$0xf]
        %v1688 = vunpack.c.l.b16 %v1656
        %v1689 = vunpack.c.l.b16 %v1657
        %v1690 = vunpack.c.l.b16 %v1658
        %v1691 = vunpack.c.l.b16 %v1659
        %v1692 = vunpack.c.l.b16 %v1660
        %v1693 = vunpack.c.l.b16 %v1661
        %v1694 = vunpack.c.l.b16 %v1662
        %v1695 = vunpack.c.l.b16 %v1663
        %v1696 = vunpack.c.l.b16 %v1664
        %v1697 = vunpack.c.l.b16 %v1665
        %v1698 = vunpack.c.l.b16 %v1666
        %v1699 = vunpack.c.l.b16 %v1667
        %v1700 = vunpack.c.l.b16 %v1668
        %v1701 = vunpack.c.l.b16 %v1669
        %v1702 = vunpack.c.l.b16 %v1670
        %v1703 = vunpack.c.l.b16 %v1671
        %v1704 = vpack.c.b16 %v1689, %v1688
        %v1705 = vpack.c.b16 %v1691, %v1690
        %v1706 = vpack.c.b16 %v1693, %v1692
        %v1707 = vpack.c.b16 %v1695, %v1694
        %v1708 = vpack.c.b16 %v1697, %v1696
        %v1709 = vpack.c.b16 %v1699, %v1698
        %v1710 = vpack.c.b16 %v1701, %v1700
        %v1711 = vpack.c.b16 %v1703, %v1702
        %1720 = vmatpush.bf16.msra.mxu0 %v1711
        %1721 = vmatpush.bf16.msra.mxu0 %v1710
        %1722 = vmatpush.bf16.msra.mxu0 %v1709
        %1723 = vmatpush.bf16.msra.mxu0 %v1708
        %1724 = vmatpush.bf16.msra.mxu0 %v1707
        %1725 = vmatpush.bf16.msra.mxu0 %v1706
        %1726 = vmatpush.bf16.msra.mxu0 %v1705
        %1727 = vmatpush.bf16.msra.mxu0 %v1704
        %1728 = vmatmul.bf16.gmra.mxu0 %v1654
        %v1729 = vpop.f32.mrf.mxu0
        %v1730 = vadd.f32 0.0, %v1729
        %v1731 = vpop.f32.mrf.mxu0
        %1732 = vdwg.mxu0
        %v1733 = vadd.f32 %v1565, %v1730
        %v1734 = vld [vmem:[%s13 + $0x1] sm:$0x1]
        %v1735 = vperm.slane %v1734, 0
        %v1736 = vadd.f32 %v1733, %v1735
        %v1737 = vadd.f32 %v1380, %v1736
        %1738 = vst.msk [vmem:[%s513] sm:$0xff] %vm518, %v1737
        %s1739 = sand.u32 %s339, 1
        %s1740 = scalar_lea.sflag [#allocation4], %s1739
        %s1741 = sand.u32 %s339, 1
        %s1742 = smul.addr %s1741, 8
        %s1743 = scalar_lea.vmem [#allocation8], %s1742
        // Predicated region
        $region89: #{tpu_custom_call.1} parent=75 // pred_check
          %p1744 = pneg %p349
        $region90: #{tpu_custom_call.1} parent=75 // pred_check_branch
          %1746 = sbr.rel (%p1744) target = $region92
        $region91: #{tpu_custom_call.1} parent=75 // pred_region
          %1748 = vsyncadd %s1740, 0
          %s1749 = smul.addr %s32, 8
          %s1750 = scalar_lea.hbm %s14, %s1749
          %s1752 = sshll.u32 %s1743, 4
          %s1753 = int_to_ptr.vmem [resolvable:$true] %s1752
          %s1754 = sshll.u32 %s1750, 4
          %s1755 = int_to_ptr.hbm [resolvable:$true] %s1754
          %1757 = dma.vmem_to_hbm [thread:$0]  %s1753, 128, %s1755, %s1740
        $region92: #{tpu_custom_call.1} parent=75 // pred_fallthru
          _
      $region76: #{tpu_custom_call.1} parent=5 // pred_fallthru
        _
      %p1758 = scmp.le.s32.totalorder 2, %s27
      // Predicated region
      $region93: #{tpu_custom_call.1} parent=5 // pred_check
        %p1759 = pneg %p1758
      $region94: #{tpu_custom_call.1} parent=5 // pred_check_branch
        %1761 = sbr.rel (%p1759) target = $region96
      $region95: #{tpu_custom_call.1} parent=5 // pred_region
        %s1762 = ssub.s32 %s27, 2
        // Predicated region
        $region97: #{tpu_custom_call.1} parent=95 // pred_check
          %p1763 = pneg %p355
        $region98: #{tpu_custom_call.1} parent=95 // pred_check_branch
          %1765 = sbr.rel (%p1763) target = $region100
        $region99: #{tpu_custom_call.1} parent=95 // pred_region
          %s1766 = sand.u32 %s340, 1
          %s1767 = scalar_lea.sflag [#allocation4], %s1766
          %s1768 = sand.u32 %s340, 1
          %s1769 = smul.addr %s1768, 8
          %s1770 = scalar_lea.vmem [#allocation8], %s1769
          %1772 = dma.done %s1767, 128
        $region100: #{tpu_custom_call.1} parent=95 // pred_fallthru
          _
      $region96: #{tpu_custom_call.1} parent=5 // pred_fallthru
        _
    $region6: #{tpu_custom_call.1} parent=1 // loop_footer
      %s31 = sadd.s32 1, %s27
    $region7: #{tpu_custom_call.1} parent=1 // loop_footer_branch
      %26 = sbr.rel target = $region3
    $region8: #{tpu_custom_call.1} parent=1 // loop_exit
      _
    %1773 = vsyncpa [#allocation3], 1
    %s1774 = scalar_lea.sflag [#allocation3], 1
    %1775 = vsyncpa %s1774, 1
    %1776 = vsyncpa [#allocation6], 1
    %1777 = vsyncpa [#allocation4], 1
    %s1778 = scalar_lea.sflag [#allocation4], 1
    %1779 = vsyncpa %s1778, 1

</llo_original>
